<compile_context>
chip_gen: v6e
topology: v6e:2x2x1
jax: 0.10.0
libtpu: 0.0.40
codegen_flags: <defaults>
</compile_context>

<pallas_src>
import numpy as np
import jax
import jax.numpy as jnp
from jax import lax
from jax.experimental import pallas as pl
from jax.experimental.pallas import tpu as pltpu

WINDOW_SIZE = 11
SIGMA = 1.5
C1 = 0.01 ** 2
C2 = 0.03 ** 2
ALPHA = (0.1, 0.1, 0.1, 0.1, 0.1, 0.1)


def _gaussian_1d(size: int, sigma: float) -> np.ndarray:
    xs = np.arange(size, dtype=np.float64) - size // 2
    g = np.exp(-(xs ** 2) / (2.0 * sigma ** 2))
    return (g / g.sum()).astype(np.float32)


def _conv_matrix(n: int, g: np.ndarray) -> np.ndarray:
    """M such that (x @ M)[..., j] == sum_k g[k] * x[..., j + k - half] (zero-padded)."""
    half = len(g) // 2
    M = np.zeros((n, n), np.float32)
    for m in range(n):
        for j in range(n):
            k = m - j + half
            if 0 <= k < len(g):
                M[m, j] = g[k]
    return M


def _loss_stats_kernel(iout_ref, igt_ref, min_ref, mout_ref, mw_ref, mh_ref, out_ref):
    # One (batch, channel) plane per grid step.
    x = iout_ref[...]                      # (h, w)
    y = igt_ref[...]                       # (h, w)
    m_in = min_ref[...] != 0.0             # (h, w) bool
    m_out = mout_ref[...] != 0.0           # (h, w) bool
    Mw = mw_ref[...]                       # (w, w) Toeplitz, conv along W (lanes)
    Mh = mh_ref[...]                       # (h, h) Toeplitz, conv along H (sublanes)

    inner = jnp.logical_not(m_out)         # ~mask_out
    xor_m = jnp.logical_xor(m_in, m_out)   # mask_in ^ mask_out

    x_in = jnp.where(inner, x, 0.0)
    y_in = jnp.where(inner, y, 0.0)
    x_df = jnp.where(xor_m, x, 0.0)
    y_df = jnp.where(xor_m, y, 0.0)

    # L1 / MSE partial sums (means applied in the wrapper).
    d_in = x_in - y_in
    d_df = x_df - y_df
    sum_abs_in = jnp.sum(jnp.abs(d_in))
    sum_abs_df = jnp.sum(jnp.abs(d_df))
    sum_sq_in = jnp.sum(d_in * d_in)
    sum_sq_df = jnp.sum(d_df * d_df)

    def conv2(p):
        # Separable zero-padded 11x11 Gaussian: two 2D MXU matmuls.
        # W-conv contracts the lane axis; H-conv is a left-multiply by Mh,
        # valid because the Gaussian window is symmetric (Mh == Mh.T).
        t = jnp.dot(p, Mw, preferred_element_type=jnp.float32)
        return jnp.dot(Mh, t, preferred_element_type=jnp.float32)

    def ssim_map_sum(p1, p2):
        mu1 = conv2(p1)
        mu2 = conv2(p2)
        exx = conv2(p1 * p1)
        eyy = conv2(p2 * p2)
        exy = conv2(p1 * p2)
        mu1_sq = mu1 * mu1
        mu2_sq = mu2 * mu2
        mu12 = mu1 * mu2
        s1 = exx - mu1_sq
        s2 = eyy - mu2_sq
        s12 = exy - mu12
        num = (2.0 * mu12 + C1) * (2.0 * s12 + C2)
        den = (mu1_sq + mu2_sq + C1) * (s1 + s2 + C2)
        # Exact divide kept: pl.reciprocal(approx=True) drifts past the
        # validation tolerance for the SSIM mean.
        return jnp.sum(num / den)

    ssim_in = ssim_map_sum(x_in, y_in)
    ssim_df = ssim_map_sum(x_df, y_df)

    # Emit the six partial statistics as lane-broadcast rows of this step's
    # private (8, 128) output tile (reduced across the grid in the wrapper).
    ones = jnp.ones((1, 128), jnp.float32)
    pad = jnp.zeros((2, 128), jnp.float32)
    out_ref[...] = jnp.concatenate(
        [sum_abs_in * ones, sum_abs_df * ones, sum_sq_in * ones, sum_sq_df * ones,
         ssim_in * ones, ssim_df * ones, pad], axis=0)


def _pallas_loss_stats(I_out, I_gt, mask_in, mask_out):
    b, c, h, w = I_out.shape
    g = _gaussian_1d(WINDOW_SIZE, SIGMA)
    Mw = jnp.asarray(_conv_matrix(w, g))
    Mh = jnp.asarray(_conv_matrix(h, g))

    # Per-step VMEM estimate: double-buffered IO + elementwise/conv temporaries.
    est_bytes = 4 * (2 * (4 * h * w + h * h + w * w + 8 * 128) + 24 * h * w)
    vmem_limit = int(min(max(2 * est_bytes, 16 * 1024 * 1024), 48 * 1024 * 1024))

    grid_spec = pltpu.PrefetchScalarGridSpec(
        num_scalar_prefetch=0,
        grid=(b, c),
        in_specs=[
            pl.BlockSpec((None, None, h, w), lambda i, j: (i, j, 0, 0)),  # I_out
            pl.BlockSpec((None, None, h, w), lambda i, j: (i, j, 0, 0)),  # I_gt
            pl.BlockSpec((None, None, h, w), lambda i, j: (i, 0, 0, 0)),  # mask_in
            pl.BlockSpec((None, None, h, w), lambda i, j: (i, 0, 0, 0)),  # mask_out
            pl.BlockSpec((w, w), lambda i, j: (0, 0)),                    # Mw (kept resident)
            pl.BlockSpec((h, h), lambda i, j: (0, 0)),                    # Mh (kept resident)
        ],
        out_specs=pl.BlockSpec((None, None, 8, 128), lambda i, j: (i, j, 0, 0)),
    )

    partial = pl.pallas_call(
        _loss_stats_kernel,
        out_shape=jax.ShapeDtypeStruct((b, c, 8, 128), jnp.float32),
        grid_spec=grid_spec,
        compiler_params=pltpu.CompilerParams(
            dimension_semantics=("parallel", "parallel"),
            vmem_limit_bytes=vmem_limit,
        ),
    )(I_out.astype(jnp.float32), I_gt.astype(jnp.float32),
      mask_in.astype(jnp.float32), mask_out.astype(jnp.float32), Mw, Mh)

    # Tiny reduction across the grid (lane 0 carries each scalar).
    return jnp.sum(partial[:, :, :6, 0], axis=(0, 1))   # (6,)


def loss_forward(I_out, I_gt, mask_in, mask_out, alpha=ALPHA):
    b, c, h, w = I_out.shape
    N_I_gt = float(c * h * w)
    total = float(b * c * h * w)
    s = _pallas_loss_stats(I_out, I_gt, mask_in, mask_out)
    l1_in, l1_df = s[0] / total, s[1] / total          # F.l1_loss (mean)
    mse_in, mse_df = s[2] / total, s[3] / total        # F.mse_loss (mean)
    ssim_in, ssim_df = s[4] / total, s[5] / total      # SSIM-map means

    L_pixel_inner = (1.0 / N_I_gt) * alpha[0] * l1_in
    L_pixel_diff = (1.0 / N_I_gt) * alpha[1] * l1_df
    L_psnr_inner = alpha[2] * 20.0 * jnp.log10(jnp.sqrt(mse_in))
    L_psnr_diff = alpha[3] * 20.0 * jnp.log10(jnp.sqrt(mse_df))
    L_ssim_inner = alpha[4] * (-ssim_in)
    # TODO(synk): original code does `alpha[5](-ssim)` which is a TypeError on a float;
    #             implemented with the evidently intended `alpha[5] * (-ssim)`.
    L_ssim_diff = alpha[5] * (-ssim_df)
    overall = (L_pixel_inner + L_pixel_diff + L_psnr_inner + L_psnr_diff
               + L_ssim_inner + L_ssim_diff)
    return (L_pixel_inner, L_pixel_diff, L_psnr_inner, L_psnr_diff,
            L_ssim_inner, L_ssim_diff, overall)


# ---------------- pure-JAX reference (for validation only) ----------------
def _ref_ssim(x, y):
    c = x.shape[1]
    g = _gaussian_1d(WINDOW_SIZE, SIGMA)
    w2d = np.outer(g, g).astype(np.float32)
    kernel = jnp.asarray(np.tile(w2d[None, None], (c, 1, 1, 1)))  # (c,1,11,11)
    half = WINDOW_SIZE // 2

    def conv(v):
        return lax.conv_general_dilated(
            v, kernel, (1, 1), [(half, half), (half, half)],
            dimension_numbers=('NCHW', 'OIHW', 'NCHW'), feature_group_count=c)

    mu1, mu2 = conv(x), conv(y)
    mu1_sq, mu2_sq, mu12 = mu1 * mu1, mu2 * mu2, mu1 * mu2
    s1 = conv(x * x) - mu1_sq
    s2 = conv(y * y) - mu2_sq
    s12 = conv(x * y) - mu12
    ssim_map = ((2 * mu12 + C1) * (2 * s12 + C2)) / ((mu1_sq + mu2_sq + C1) * (s1 + s2 + C2))
    return jnp.mean(ssim_map)


def _ref_forward(I_out, I_gt, mask_in, mask_out, alpha=ALPHA):
    b, c, h, w = I_out.shape
    N = float(c * h * w)
    m_in = mask_in != 0
    m_out = mask_out != 0
    xor_m = jnp.logical_xor(m_in, m_out)
    inner = jnp.logical_not(m_out)
    x_in = jnp.where(inner, I_out, 0.0)
    y_in = jnp.where(inner, I_gt, 0.0)
    x_df = jnp.where(xor_m, I_out, 0.0)
    y_df = jnp.where(xor_m, I_gt, 0.0)
    l1_in = jnp.mean(jnp.abs(x_in - y_in))
    l1_df = jnp.mean(jnp.abs(x_df - y_df))
    mse_in = jnp.mean((x_in - y_in) ** 2)
    mse_df = jnp.mean((x_df - y_df) ** 2)
    L_pi = (1.0 / N) * alpha[0] * l1_in
    L_pd = (1.0 / N) * alpha[1] * l1_df
    L_qi = alpha[2] * 20.0 * jnp.log10(jnp.sqrt(mse_in))
    L_qd = alpha[3] * 20.0 * jnp.log10(jnp.sqrt(mse_df))
    L_si = alpha[4] * (-_ref_ssim(x_in, y_in))
    L_sd = alpha[5] * (-_ref_ssim(x_df, y_df))
    return (L_pi, L_pd, L_qi, L_qd, L_si, L_sd, L_pi + L_pd + L_qi + L_qd + L_si + L_sd)


if __name__ == "__main__":
    key = jax.random.PRNGKey(0)
    k1, k2, k3, k4 = jax.random.split(key, 4)
    b, c, h, w = 2, 4, 16, 16
    I_out = jax.random.uniform(k1, (b, c, h, w), jnp.float32)
    I_gt = jax.random.uniform(k2, (b, c, h, w), jnp.float32)
    mask_in = (jax.random.uniform(k3, (b, 1, h, w)) > 0.3).astype(jnp.float32)
    mask_out = (jax.random.uniform(k4, (b, 1, h, w)) > 0.7).astype(jnp.float32)

    outs = jax.block_until_ready(loss_forward(I_out, I_gt, mask_in, mask_out))
    refs = jax.block_until_ready(_ref_forward(I_out, I_gt, mask_in, mask_out))
    for a, r in zip(outs, refs):
        np.testing.assert_allclose(np.asarray(a), np.asarray(r), rtol=5e-4, atol=5e-5)

    print("KERNEL_OK")
</pallas_src>

<mosaic_0001>
module attributes {stable_mosaic.version = 11 : i64} {
  func.func @_loss_stats_kernel(%arg0: i32, %arg1: i32, %arg2: memref<1x1x16x16xf32, #tpu.memory_space<vmem>>, %arg3: memref<1x1x16x16xf32, #tpu.memory_space<vmem>>, %arg4: memref<1x1x16x16xf32, #tpu.memory_space<vmem>>, %arg5: memref<1x1x16x16xf32, #tpu.memory_space<vmem>>, %arg6: memref<16x16xf32, #tpu.memory_space<vmem>>, %arg7: memref<16x16xf32, #tpu.memory_space<vmem>>, %arg8: memref<1x1x8x128xf32, #tpu.memory_space<vmem>>) attributes {dimension_semantics = [#tpu.dimension_semantics<parallel>, #tpu.dimension_semantics<parallel>], iteration_bounds = array<i64: 2, 4>, scalar_prefetch = 0 : i64, scratch_operands = 0 : i64, tpu.core_type = #tpu.core_type<tc>, window_params = [{transform_indices = @transform_0, window_bounds = array<i64: 1, 1, 16, 16>}, {transform_indices = @transform_1, window_bounds = array<i64: 1, 1, 16, 16>}, {transform_indices = @transform_2, window_bounds = array<i64: 1, 1, 16, 16>}, {transform_indices = @transform_3, window_bounds = array<i64: 1, 1, 16, 16>}, {pipeline_mode = #tpu.pipeline_mode<synchronous>, transform_indices = @transform_4, window_bounds = array<i64: 16, 16>}, {pipeline_mode = #tpu.pipeline_mode<synchronous>, transform_indices = @transform_5, window_bounds = array<i64: 16, 16>}, {transform_indices = @transform_6, window_bounds = array<i64: 1, 1, 8, 128>}]} {
    %c0 = arith.constant 0 : index
    %c0_0 = arith.constant 0 : index
    %c0_1 = arith.constant 0 : index
    %c0_2 = arith.constant 0 : index
    %0 = vector.load %arg2[%c0, %c0_0, %c0_1, %c0_2] : memref<1x1x16x16xf32, #tpu.memory_space<vmem>>, vector<1x1x16x16xf32>
    %1 = vector.shape_cast %0 : vector<1x1x16x16xf32> to vector<16x16xf32>
    %c0_3 = arith.constant 0 : index
    %c0_4 = arith.constant 0 : index
    %c0_5 = arith.constant 0 : index
    %c0_6 = arith.constant 0 : index
    %2 = vector.load %arg3[%c0_3, %c0_4, %c0_5, %c0_6] : memref<1x1x16x16xf32, #tpu.memory_space<vmem>>, vector<1x1x16x16xf32>
    %3 = vector.shape_cast %2 : vector<1x1x16x16xf32> to vector<16x16xf32>
    %c0_7 = arith.constant 0 : index
    %c0_8 = arith.constant 0 : index
    %c0_9 = arith.constant 0 : index
    %c0_10 = arith.constant 0 : index
    %4 = vector.load %arg4[%c0_7, %c0_8, %c0_9, %c0_10] : memref<1x1x16x16xf32, #tpu.memory_space<vmem>>, vector<1x1x16x16xf32>
    %5 = vector.shape_cast %4 : vector<1x1x16x16xf32> to vector<16x16xf32>
    %cst = arith.constant 0.000000e+00 : f32
    %6 = vector.broadcast %cst : f32 to vector<16x16xf32>
    %7 = arith.cmpf one, %5, %6 : vector<16x16xf32>
    %c0_11 = arith.constant 0 : index
    %c0_12 = arith.constant 0 : index
    %c0_13 = arith.constant 0 : index
    %c0_14 = arith.constant 0 : index
    %8 = vector.load %arg5[%c0_11, %c0_12, %c0_13, %c0_14] : memref<1x1x16x16xf32, #tpu.memory_space<vmem>>, vector<1x1x16x16xf32>
    %9 = vector.shape_cast %8 : vector<1x1x16x16xf32> to vector<16x16xf32>
    %cst_15 = arith.constant 0.000000e+00 : f32
    %10 = vector.broadcast %cst_15 : f32 to vector<16x16xf32>
    %11 = arith.cmpf one, %9, %10 : vector<16x16xf32>
    %c0_16 = arith.constant 0 : index
    %c0_17 = arith.constant 0 : index
    %12 = vector.load %arg6[%c0_16, %c0_17] : memref<16x16xf32, #tpu.memory_space<vmem>>, vector<16x16xf32>
    %c0_18 = arith.constant 0 : index
    %c0_19 = arith.constant 0 : index
    %13 = vector.load %arg7[%c0_18, %c0_19] : memref<16x16xf32, #tpu.memory_space<vmem>>, vector<16x16xf32>
    %cst_20 = arith.constant dense<true> : vector<16x16xi1>
    %14 = arith.xori %11, %cst_20 : vector<16x16xi1>
    %15 = arith.xori %7, %11 : vector<16x16xi1>
    %cst_21 = arith.constant 0.000000e+00 : f32
    %16 = vector.broadcast %cst_21 : f32 to vector<16x16xf32>
    %17 = arith.select %14, %1, %16 : vector<16x16xi1>, vector<16x16xf32>
    %cst_22 = arith.constant 0.000000e+00 : f32
    %18 = vector.broadcast %cst_22 : f32 to vector<16x16xf32>
    %19 = arith.select %14, %3, %18 : vector<16x16xi1>, vector<16x16xf32>
    %cst_23 = arith.constant 0.000000e+00 : f32
    %20 = vector.broadcast %cst_23 : f32 to vector<16x16xf32>
    %21 = arith.select %15, %1, %20 : vector<16x16xi1>, vector<16x16xf32>
    %cst_24 = arith.constant 0.000000e+00 : f32
    %22 = vector.broadcast %cst_24 : f32 to vector<16x16xf32>
    %23 = arith.select %15, %3, %22 : vector<16x16xi1>, vector<16x16xf32>
    %24 = arith.subf %17, %19 : vector<16x16xf32>
    %25 = arith.subf %21, %23 : vector<16x16xf32>
    %26 = math.absf %24 : vector<16x16xf32>
    %27 = vector.shape_cast %26 : vector<16x16xf32> to vector<1x16x16xf32>
    %cst_25 = arith.constant dense<0.000000e+00> : vector<1xf32>
    %28 = vector.multi_reduction <add>, %27, %cst_25 [1, 2] : vector<1x16x16xf32> to vector<1xf32>
    %29 = vector.shape_cast %28 : vector<1xf32> to vector<1x1x1xf32>
    %30 = vector.extract %29[0, 0, 0] : f32 from vector<1x1x1xf32>
    %31 = math.absf %25 : vector<16x16xf32>
    %32 = vector.shape_cast %31 : vector<16x16xf32> to vector<1x16x16xf32>
    %cst_26 = arith.constant dense<0.000000e+00> : vector<1xf32>
    %33 = vector.multi_reduction <add>, %32, %cst_26 [1, 2] : vector<1x16x16xf32> to vector<1xf32>
    %34 = vector.shape_cast %33 : vector<1xf32> to vector<1x1x1xf32>
    %35 = vector.extract %34[0, 0, 0] : f32 from vector<1x1x1xf32>
    %36 = arith.mulf %24, %24 : vector<16x16xf32>
    %37 = vector.shape_cast %36 : vector<16x16xf32> to vector<1x16x16xf32>
    %cst_27 = arith.constant dense<0.000000e+00> : vector<1xf32>
    %38 = vector.multi_reduction <add>, %37, %cst_27 [1, 2] : vector<1x16x16xf32> to vector<1xf32>
    %39 = vector.shape_cast %38 : vector<1xf32> to vector<1x1x1xf32>
    %40 = vector.extract %39[0, 0, 0] : f32 from vector<1x1x1xf32>
    %41 = arith.mulf %25, %25 : vector<16x16xf32>
    %42 = vector.shape_cast %41 : vector<16x16xf32> to vector<1x16x16xf32>
    %cst_28 = arith.constant dense<0.000000e+00> : vector<1xf32>
    %43 = vector.multi_reduction <add>, %42, %cst_28 [1, 2] : vector<1x16x16xf32> to vector<1xf32>
    %44 = vector.shape_cast %43 : vector<1xf32> to vector<1x1x1xf32>
    %45 = vector.extract %44[0, 0, 0] : f32 from vector<1x1x1xf32>
    %cst_29 = arith.constant dense<0.000000e+00> : vector<16x16xf32>
    %46 = tpu.matmul %17, %12, %cst_29 {dimension_numbers = #tpu.dot_dimension_numbers<[1], [0], [0], [1], [0, 0, 1, 1], [], []>} : vector<16x16xf32>, vector<16x16xf32>, vector<16x16xf32> -> vector<16x16xf32>
    %cst_30 = arith.constant dense<0.000000e+00> : vector<16x16xf32>
    %47 = tpu.matmul %13, %46, %cst_30 {dimension_numbers = #tpu.dot_dimension_numbers<[1], [0], [0], [1], [0, 0, 1, 1], [], []>} : vector<16x16xf32>, vector<16x16xf32>, vector<16x16xf32> -> vector<16x16xf32>
    %cst_31 = arith.constant dense<0.000000e+00> : vector<16x16xf32>
    %48 = tpu.matmul %19, %12, %cst_31 {dimension_numbers = #tpu.dot_dimension_numbers<[1], [0], [0], [1], [0, 0, 1, 1], [], []>} : vector<16x16xf32>, vector<16x16xf32>, vector<16x16xf32> -> vector<16x16xf32>
    %cst_32 = arith.constant dense<0.000000e+00> : vector<16x16xf32>
    %49 = tpu.matmul %13, %48, %cst_32 {dimension_numbers = #tpu.dot_dimension_numbers<[1], [0], [0], [1], [0, 0, 1, 1], [], []>} : vector<16x16xf32>, vector<16x16xf32>, vector<16x16xf32> -> vector<16x16xf32>
    %50 = arith.mulf %17, %17 : vector<16x16xf32>
    %cst_33 = arith.constant dense<0.000000e+00> : vector<16x16xf32>
    %51 = tpu.matmul %50, %12, %cst_33 {dimension_numbers = #tpu.dot_dimension_numbers<[1], [0], [0], [1], [0, 0, 1, 1], [], []>} : vector<16x16xf32>, vector<16x16xf32>, vector<16x16xf32> -> vector<16x16xf32>
    %cst_34 = arith.constant dense<0.000000e+00> : vector<16x16xf32>
    %52 = tpu.matmul %13, %51, %cst_34 {dimension_numbers = #tpu.dot_dimension_numbers<[1], [0], [0], [1], [0, 0, 1, 1], [], []>} : vector<16x16xf32>, vector<16x16xf32>, vector<16x16xf32> -> vector<16x16xf32>
    %53 = arith.mulf %19, %19 : vector<16x16xf32>
    %cst_35 = arith.constant dense<0.000000e+00> : vector<16x16xf32>
    %54 = tpu.matmul %53, %12, %cst_35 {dimension_numbers = #tpu.dot_dimension_numbers<[1], [0], [0], [1], [0, 0, 1, 1], [], []>} : vector<16x16xf32>, vector<16x16xf32>, vector<16x16xf32> -> vector<16x16xf32>
    %cst_36 = arith.constant dense<0.000000e+00> : vector<16x16xf32>
    %55 = tpu.matmul %13, %54, %cst_36 {dimension_numbers = #tpu.dot_dimension_numbers<[1], [0], [0], [1], [0, 0, 1, 1], [], []>} : vector<16x16xf32>, vector<16x16xf32>, vector<16x16xf32> -> vector<16x16xf32>
    %56 = arith.mulf %17, %19 : vector<16x16xf32>
    %cst_37 = arith.constant dense<0.000000e+00> : vector<16x16xf32>
    %57 = tpu.matmul %56, %12, %cst_37 {dimension_numbers = #tpu.dot_dimension_numbers<[1], [0], [0], [1], [0, 0, 1, 1], [], []>} : vector<16x16xf32>, vector<16x16xf32>, vector<16x16xf32> -> vector<16x16xf32>
    %cst_38 = arith.constant dense<0.000000e+00> : vector<16x16xf32>
    %58 = tpu.matmul %13, %57, %cst_38 {dimension_numbers = #tpu.dot_dimension_numbers<[1], [0], [0], [1], [0, 0, 1, 1], [], []>} : vector<16x16xf32>, vector<16x16xf32>, vector<16x16xf32> -> vector<16x16xf32>
    %59 = arith.mulf %47, %47 : vector<16x16xf32>
    %60 = arith.mulf %49, %49 : vector<16x16xf32>
    %61 = arith.mulf %47, %49 : vector<16x16xf32>
    %62 = arith.subf %52, %59 : vector<16x16xf32>
    %63 = arith.subf %55, %60 : vector<16x16xf32>
    %64 = arith.subf %58, %61 : vector<16x16xf32>
    %cst_39 = arith.constant 2.000000e+00 : f32
    %65 = vector.broadcast %cst_39 : f32 to vector<16x16xf32>
    %66 = arith.mulf %65, %61 : vector<16x16xf32>
    %cst_40 = arith.constant 9.99999974E-5 : f32
    %67 = vector.broadcast %cst_40 : f32 to vector<16x16xf32>
    %68 = arith.addf %66, %67 : vector<16x16xf32>
    %cst_41 = arith.constant 2.000000e+00 : f32
    %69 = vector.broadcast %cst_41 : f32 to vector<16x16xf32>
    %70 = arith.mulf %69, %64 : vector<16x16xf32>
    %cst_42 = arith.constant 8.99999984E-4 : f32
    %71 = vector.broadcast %cst_42 : f32 to vector<16x16xf32>
    %72 = arith.addf %70, %71 : vector<16x16xf32>
    %73 = arith.mulf %68, %72 : vector<16x16xf32>
    %74 = arith.addf %59, %60 : vector<16x16xf32>
    %cst_43 = arith.constant 9.99999974E-5 : f32
    %75 = vector.broadcast %cst_43 : f32 to vector<16x16xf32>
    %76 = arith.addf %74, %75 : vector<16x16xf32>
    %77 = arith.addf %62, %63 : vector<16x16xf32>
    %cst_44 = arith.constant 8.99999984E-4 : f32
    %78 = vector.broadcast %cst_44 : f32 to vector<16x16xf32>
    %79 = arith.addf %77, %78 : vector<16x16xf32>
    %80 = arith.mulf %76, %79 : vector<16x16xf32>
    %81 = arith.divf %73, %80 : vector<16x16xf32>
    %82 = vector.shape_cast %81 : vector<16x16xf32> to vector<1x16x16xf32>
    %cst_45 = arith.constant dense<0.000000e+00> : vector<1xf32>
    %83 = vector.multi_reduction <add>, %82, %cst_45 [1, 2] : vector<1x16x16xf32> to vector<1xf32>
    %84 = vector.shape_cast %83 : vector<1xf32> to vector<1x1x1xf32>
    %85 = vector.extract %84[0, 0, 0] : f32 from vector<1x1x1xf32>
    %cst_46 = arith.constant dense<0.000000e+00> : vector<16x16xf32>
    %86 = tpu.matmul %21, %12, %cst_46 {dimension_numbers = #tpu.dot_dimension_numbers<[1], [0], [0], [1], [0, 0, 1, 1], [], []>} : vector<16x16xf32>, vector<16x16xf32>, vector<16x16xf32> -> vector<16x16xf32>
    %cst_47 = arith.constant dense<0.000000e+00> : vector<16x16xf32>
    %87 = tpu.matmul %13, %86, %cst_47 {dimension_numbers = #tpu.dot_dimension_numbers<[1], [0], [0], [1], [0, 0, 1, 1], [], []>} : vector<16x16xf32>, vector<16x16xf32>, vector<16x16xf32> -> vector<16x16xf32>
    %cst_48 = arith.constant dense<0.000000e+00> : vector<16x16xf32>
    %88 = tpu.matmul %23, %12, %cst_48 {dimension_numbers = #tpu.dot_dimension_numbers<[1], [0], [0], [1], [0, 0, 1, 1], [], []>} : vector<16x16xf32>, vector<16x16xf32>, vector<16x16xf32> -> vector<16x16xf32>
    %cst_49 = arith.constant dense<0.000000e+00> : vector<16x16xf32>
    %89 = tpu.matmul %13, %88, %cst_49 {dimension_numbers = #tpu.dot_dimension_numbers<[1], [0], [0], [1], [0, 0, 1, 1], [], []>} : vector<16x16xf32>, vector<16x16xf32>, vector<16x16xf32> -> vector<16x16xf32>
    %90 = arith.mulf %21, %21 : vector<16x16xf32>
    %cst_50 = arith.constant dense<0.000000e+00> : vector<16x16xf32>
    %91 = tpu.matmul %90, %12, %cst_50 {dimension_numbers = #tpu.dot_dimension_numbers<[1], [0], [0], [1], [0, 0, 1, 1], [], []>} : vector<16x16xf32>, vector<16x16xf32>, vector<16x16xf32> -> vector<16x16xf32>
    %cst_51 = arith.constant dense<0.000000e+00> : vector<16x16xf32>
    %92 = tpu.matmul %13, %91, %cst_51 {dimension_numbers = #tpu.dot_dimension_numbers<[1], [0], [0], [1], [0, 0, 1, 1], [], []>} : vector<16x16xf32>, vector<16x16xf32>, vector<16x16xf32> -> vector<16x16xf32>
    %93 = arith.mulf %23, %23 : vector<16x16xf32>
    %cst_52 = arith.constant dense<0.000000e+00> : vector<16x16xf32>
    %94 = tpu.matmul %93, %12, %cst_52 {dimension_numbers = #tpu.dot_dimension_numbers<[1], [0], [0], [1], [0, 0, 1, 1], [], []>} : vector<16x16xf32>, vector<16x16xf32>, vector<16x16xf32> -> vector<16x16xf32>
    %cst_53 = arith.constant dense<0.000000e+00> : vector<16x16xf32>
    %95 = tpu.matmul %13, %94, %cst_53 {dimension_numbers = #tpu.dot_dimension_numbers<[1], [0], [0], [1], [0, 0, 1, 1], [], []>} : vector<16x16xf32>, vector<16x16xf32>, vector<16x16xf32> -> vector<16x16xf32>
    %96 = arith.mulf %21, %23 : vector<16x16xf32>
    %cst_54 = arith.constant dense<0.000000e+00> : vector<16x16xf32>
    %97 = tpu.matmul %96, %12, %cst_54 {dimension_numbers = #tpu.dot_dimension_numbers<[1], [0], [0], [1], [0, 0, 1, 1], [], []>} : vector<16x16xf32>, vector<16x16xf32>, vector<16x16xf32> -> vector<16x16xf32>
    %cst_55 = arith.constant dense<0.000000e+00> : vector<16x16xf32>
    %98 = tpu.matmul %13, %97, %cst_55 {dimension_numbers = #tpu.dot_dimension_numbers<[1], [0], [0], [1], [0, 0, 1, 1], [], []>} : vector<16x16xf32>, vector<16x16xf32>, vector<16x16xf32> -> vector<16x16xf32>
    %99 = arith.mulf %87, %87 : vector<16x16xf32>
    %100 = arith.mulf %89, %89 : vector<16x16xf32>
    %101 = arith.mulf %87, %89 : vector<16x16xf32>
    %102 = arith.subf %92, %99 : vector<16x16xf32>
    %103 = arith.subf %95, %100 : vector<16x16xf32>
    %104 = arith.subf %98, %101 : vector<16x16xf32>
    %cst_56 = arith.constant 2.000000e+00 : f32
    %105 = vector.broadcast %cst_56 : f32 to vector<16x16xf32>
    %106 = arith.mulf %105, %101 : vector<16x16xf32>
    %cst_57 = arith.constant 9.99999974E-5 : f32
    %107 = vector.broadcast %cst_57 : f32 to vector<16x16xf32>
    %108 = arith.addf %106, %107 : vector<16x16xf32>
    %cst_58 = arith.constant 2.000000e+00 : f32
    %109 = vector.broadcast %cst_58 : f32 to vector<16x16xf32>
    %110 = arith.mulf %109, %104 : vector<16x16xf32>
    %cst_59 = arith.constant 8.99999984E-4 : f32
    %111 = vector.broadcast %cst_59 : f32 to vector<16x16xf32>
    %112 = arith.addf %110, %111 : vector<16x16xf32>
    %113 = arith.mulf %108, %112 : vector<16x16xf32>
    %114 = arith.addf %99, %100 : vector<16x16xf32>
    %cst_60 = arith.constant 9.99999974E-5 : f32
    %115 = vector.broadcast %cst_60 : f32 to vector<16x16xf32>
    %116 = arith.addf %114, %115 : vector<16x16xf32>
    %117 = arith.addf %102, %103 : vector<16x16xf32>
    %cst_61 = arith.constant 8.99999984E-4 : f32
    %118 = vector.broadcast %cst_61 : f32 to vector<16x16xf32>
    %119 = arith.addf %117, %118 : vector<16x16xf32>
    %120 = arith.mulf %116, %119 : vector<16x16xf32>
    %121 = arith.divf %113, %120 : vector<16x16xf32>
    %122 = vector.shape_cast %121 : vector<16x16xf32> to vector<1x16x16xf32>
    %cst_62 = arith.constant dense<0.000000e+00> : vector<1xf32>
    %123 = vector.multi_reduction <add>, %122, %cst_62 [1, 2] : vector<1x16x16xf32> to vector<1xf32>
    %124 = vector.shape_cast %123 : vector<1xf32> to vector<1x1x1xf32>
    %125 = vector.extract %124[0, 0, 0] : f32 from vector<1x1x1xf32>
    %cst_63 = arith.constant 1.000000e+00 : f32
    %126 = vector.broadcast %cst_63 : f32 to vector<1x128xf32>
    %cst_64 = arith.constant 0.000000e+00 : f32
    %127 = vector.broadcast %cst_64 : f32 to vector<2x128xf32>
    %128 = vector.broadcast %30 : f32 to vector<1x128xf32>
    %129 = arith.mulf %128, %126 : vector<1x128xf32>
    %130 = vector.broadcast %35 : f32 to vector<1x128xf32>
    %131 = arith.mulf %130, %126 : vector<1x128xf32>
    %132 = vector.broadcast %40 : f32 to vector<1x128xf32>
    %133 = arith.mulf %132, %126 : vector<1x128xf32>
    %134 = vector.broadcast %45 : f32 to vector<1x128xf32>
    %135 = arith.mulf %134, %126 : vector<1x128xf32>
    %136 = vector.broadcast %85 : f32 to vector<1x128xf32>
    %137 = arith.mulf %136, %126 : vector<1x128xf32>
    %138 = vector.broadcast %125 : f32 to vector<1x128xf32>
    %139 = arith.mulf %138, %126 : vector<1x128xf32>
    %140 = tpu.concatenate %129, %131, %133, %135, %137, %139, %127 in 0 : vector<1x128xf32>, vector<1x128xf32>, vector<1x128xf32>, vector<1x128xf32>, vector<1x128xf32>, vector<1x128xf32>, vector<2x128xf32> -> vector<8x128xf32>
    %c0_65 = arith.constant 0 : index
    %c0_66 = arith.constant 0 : index
    %c0_67 = arith.constant 0 : index
    %c0_68 = arith.constant 0 : index
    %141 = vector.load %arg8[%c0_65, %c0_66, %c0_67, %c0_68] : memref<1x1x8x128xf32, #tpu.memory_space<vmem>>, vector<1x1x8x128xf32>
    %142 = vector.shape_cast %141 : vector<1x1x8x128xf32> to vector<8x128xf32>
    %143 = vector.shape_cast %140 : vector<8x128xf32> to vector<1x1x8x128xf32>
    tpu.vector_store %arg8[%c0_65, %c0_66, %c0_67, %c0_68], %143 {strides = array<i32>} : memref<1x1x8x128xf32, #tpu.memory_space<vmem>>, vector<1x1x8x128xf32>,
    return
  }
  func.func @transform_0(%arg0: i32, %arg1: i32) -> (i32, i32, i32, i32) {
    %c0_i32 = arith.constant 0 : i32
    %c0_i32_0 = arith.constant 0 : i32
    %c0_i32_1 = arith.constant 0 : i32
    return %arg0, %arg1, %c0_i32, %c0_i32_0 : i32, i32, i32, i32
  }
  func.func @transform_1(%arg0: i32, %arg1: i32) -> (i32, i32, i32, i32) {
    %c0_i32 = arith.constant 0 : i32
    %c0_i32_0 = arith.constant 0 : i32
    %c0_i32_1 = arith.constant 0 : i32
    return %arg0, %arg1, %c0_i32, %c0_i32_0 : i32, i32, i32, i32
  }
  func.func @transform_2(%arg0: i32, %arg1: i32) -> (i32, i32, i32, i32) {
    %c0_i32 = arith.constant 0 : i32
    %c0_i32_0 = arith.constant 0 : i32
    %c0_i32_1 = arith.constant 0 : i32
    %c0_i32_2 = arith.constant 0 : i32
    return %arg0, %c0_i32, %c0_i32_0, %c0_i32_1 : i32, i32, i32, i32
  }
  func.func @transform_3(%arg0: i32, %arg1: i32) -> (i32, i32, i32, i32) {
    %c0_i32 = arith.constant 0 : i32
    %c0_i32_0 = arith.constant 0 : i32
    %c0_i32_1 = arith.constant 0 : i32
    %c0_i32_2 = arith.constant 0 : i32
    return %arg0, %c0_i32, %c0_i32_0, %c0_i32_1 : i32, i32, i32, i32
  }
  func.func @transform_4(%arg0: i32, %arg1: i32) -> (i32, i32) {
    %c0_i32 = arith.constant 0 : i32
    %c0_i32_0 = arith.constant 0 : i32
    %c0_i32_1 = arith.constant 0 : i32
    return %c0_i32, %c0_i32_0 : i32, i32
  }
  func.func @transform_5(%arg0: i32, %arg1: i32) -> (i32, i32) {
    %c0_i32 = arith.constant 0 : i32
    %c0_i32_0 = arith.constant 0 : i32
    %c0_i32_1 = arith.constant 0 : i32
    return %c0_i32, %c0_i32_0 : i32, i32
  }
  func.func @transform_6(%arg0: i32, %arg1: i32) -> (i32, i32, i32, i32) {
    %c0_i32 = arith.constant 0 : i32
    %c0_i32_0 = arith.constant 0 : i32
    %c0_i32_1 = arith.constant 0 : i32
    return %arg0, %arg1, %c0_i32, %c0_i32_0 : i32, i32, i32, i32
  }
}

</mosaic_0001>

<llo_original>
// kernel: tpu_custom_call.1
$region0: #{tpu_custom_call.1}
  #allocation0 [shape = 'u32[]', space=smem, size = 0x4, offset = 0x4, fixed_abs, tag = 'smem constant byte address 0x4 - core index']
  #allocation1 [shape = 'u32[144,128]{1,0:T(1,128)}', space=vmem, size = 0x12000, scoped, tag = 'internal scratch']
  %s0 = inlined_call_operand.hbm [shape: f32[2,4,16,16], index: 0, kind: input, shape index: {}]
  %s1 = inlined_call_operand.hbm [shape: f32[2,4,16,16], index: 1, kind: input, shape index: {}]
  %s2 = inlined_call_operand.hbm [shape: f32[2,1,16,16], index: 2, kind: input, shape index: {}]
  %s3 = inlined_call_operand.hbm [shape: f32[2,1,16,16], index: 3, kind: input, shape index: {}]
  %s4 = inlined_call_operand.hbm [shape: f32[16,16], index: 4, kind: input, shape index: {}]
  %s5 = inlined_call_operand.hbm [shape: f32[16,16], index: 5, kind: input, shape index: {}]
  %s6 = inlined_call_operand.hbm [shape: f32[2,4,8,128], index: 6, kind: output, shape index: {}]
  %s7 = sld [smem:[#allocation0]]
  $region81: #{tpu_custom_call.1} parent=0
    _
  %s9 = ssub.s32 1, %s7
  %s10 = scalar_select 0, %s9, %s7
  $region1: #{tpu_custom_call.1} parent=0
    #allocation2 [shape = 'u8[16384]{0}', space=vmem, size = 0x4000, scoped, tag = 'input window, operand 0']
    #allocation3 [shape = 's32[2]{0}', space=sflag, size = 0x8, scoped, tag = 'scoped memory for tpu_custom_call.1']
    #allocation4 [shape = 's32[2]{0}', space=sflag, size = 0x8, scoped, tag = 'scoped memory for tpu_custom_call.1']
    #allocation5 [shape = 'u8[16384]{0}', space=vmem, size = 0x4000, scoped, tag = 'input window, operand 1']
    #allocation6 [shape = 's32[2]{0}', space=sflag, size = 0x8, scoped, tag = 'scoped memory for tpu_custom_call.1']
    #allocation7 [shape = 'u8[16384]{0}', space=vmem, size = 0x4000, scoped, tag = 'input window, operand 2']
    #allocation8 [shape = 'u8[16384]{0}', space=vmem, size = 0x4000, scoped, tag = 'input window, operand 3']
    #allocation9 [shape = 's32[2]{0}', space=sflag, size = 0x8, scoped, tag = 'scoped memory for tpu_custom_call.1']
    #allocation10 [shape = 'u8[8192]{0}', space=vmem, size = 0x2000, scoped, tag = 'input window, operand 4, single buffered']
    #allocation11 [shape = 'u8[8192]{0}', space=vmem, size = 0x2000, scoped, tag = 'input window, operand 5, single buffered']
    #allocation12 [shape = 's32[1]{0}', space=sflag, size = 0x4, scoped, tag = 'scoped memory for tpu_custom_call.1']
    #allocation13 [shape = 'u8[8192]{0}', space=vmem, size = 0x2000, scoped, tag = 'output window, operand 0']
    %11 = vsyncpa [#allocation3], 0
    %s12 = scalar_lea.sflag [#allocation3], 1
    %13 = vsyncpa %s12, 0
    %14 = vsyncpa [#allocation6], 0
    %s15 = scalar_lea.sflag [#allocation6], 1
    %16 = vsyncpa %s15, 0
    %17 = vsyncpa [#allocation9], 0
    %s18 = scalar_lea.sflag [#allocation9], 1
    %19 = vsyncpa %s18, 0
    %20 = vsyncpa [#allocation12], 0
    %21 = vsyncpa [#allocation4], 0
    %s22 = scalar_lea.sflag [#allocation4], 1
    %23 = vsyncpa %s22, 0
    loop: start=0, step=1, limit=10
    $region2: #{tpu_custom_call.1} parent=1 // loop_pre_header
      _
    $region3: #{tpu_custom_call.1} parent=1 // loop_header
      %s25 = sphi 0, %s29
      %p26 = scmp.ge.s32.totalorder %s25, 10
      %s32 = sphi 0, %s44
      %s33 = sphi 0, %s40
      %s34 = sphi 0, %s32
      %s35 = sphi 0, %s33
      %s36 = sphi 0, %s34
      %s37 = sphi 0, %s35
      %s49 = sphi 0, %s51
      %s52 = sphi 0, %s49
      %s53 = sphi 0, %s52
      %s69 = sphi 0, %s53
      %s77 = sphi 0, %s79
      %s80 = sphi 0, %s77
      %s81 = sphi 0, %s80
      %s97 = sphi 0, %s81
      %s103 = sphi 0, %s105
      %s106 = sphi 0, %s103
      %s107 = sphi 0, %s106
      %s123 = sphi 0, %s107
      %s129 = sphi 0, %s131
      %s132 = sphi 0, %s129
      %s133 = sphi 0, %s132
      %s149 = sphi 0, %s133
      %s153 = sphi 0, %s153
      %s155 = sphi 0, %s153
      %s156 = sphi 0, %s155
      %s170 = sphi 0, %s156
      %s174 = sphi 0, %s174
      %s176 = sphi 0, %s174
      %s177 = sphi 0, %s176
      %s191 = sphi 0, %s177
      %s199 = sphi 0, %s201
      %s202 = sphi 0, %s199
      %s203 = sphi 0, %s202
      %s219 = sphi 0, %s203
    $region4: #{tpu_custom_call.1} parent=1 // loop_header_branch
      %28 = sbr.rel (%p26) target = $region8
    $region5: #{tpu_custom_call.1} parent=1 // loop_body
      %s30 = ssub.s32 %s25, 1
      %s31 = ssub.s32 %s25, 2
      %s38 = sadd.s32 1, %s33
      %p39 = scmp.ge.s32.totalorder %s38, 4
      %s40 = scalar_select %p39, 0, %s38
      %s41 = sadd.s32 1, %s32
      %s42 = scalar_select %p39, %s41, %s32
      %p43 = scmp.ge.s32.totalorder %s42, 2
      %s44 = scalar_select %p43, 0, %s42
      %s45 = ssub.s32 %s32, %s44
      %s46 = ssub.s32 %s33, %s40
      %s47 = sor.u32 %s45, %s46
      %p48 = scmp.eq.s32.totalorder %s47, 0
      %s50 = sadd.s32 %s49, 1
      %s51 = scalar_select %p48, %s49, %s50
      %p54 = pneg %p48
      %p55 = scmp.eq.s32.totalorder %s25, 7
      %p56 = por %p54, %p55
      %p57 = scmp.ne.s32.totalorder %s49, %s52
      %p58 = scmp.eq.s32.totalorder %s25, 0
      %p59 = por %p57, %p58
      %p60 = scmp.ne.s32.totalorder %s49, %s52
      %p61 = scmp.eq.s32.totalorder %s30, 7
      %p62 = por %p60, %p61
      %p63 = scmp.ne.s32.totalorder %s52, %s53
      %p64 = scmp.eq.s32.totalorder %s30, 0
      %p65 = por %p63, %p64
      %p66 = scmp.ne.s32.totalorder %s52, %s53
      %p67 = scmp.eq.s32.totalorder %s31, 7
      %p68 = por %p66, %p67
      %p70 = scmp.ne.s32.totalorder %s53, %s69
      %p71 = scmp.eq.s32.totalorder %s31, 0
      %p72 = por %p70, %p71
      %s73 = ssub.s32 %s32, %s44
      %s74 = ssub.s32 %s33, %s40
      %s75 = sor.u32 %s73, %s74
      %p76 = scmp.eq.s32.totalorder %s75, 0
      %s78 = sadd.s32 %s77, 1
      %s79 = scalar_select %p76, %s77, %s78
      %p82 = pneg %p76
      %p83 = scmp.eq.s32.totalorder %s25, 7
      %p84 = por %p82, %p83
      %p85 = scmp.ne.s32.totalorder %s77, %s80
      %p86 = scmp.eq.s32.totalorder %s25, 0
      %p87 = por %p85, %p86
      %p88 = scmp.ne.s32.totalorder %s77, %s80
      %p89 = scmp.eq.s32.totalorder %s30, 7
      %p90 = por %p88, %p89
      %p91 = scmp.ne.s32.totalorder %s80, %s81
      %p92 = scmp.eq.s32.totalorder %s30, 0
      %p93 = por %p91, %p92
      %p94 = scmp.ne.s32.totalorder %s80, %s81
      %p95 = scmp.eq.s32.totalorder %s31, 7
      %p96 = por %p94, %p95
      %p98 = scmp.ne.s32.totalorder %s81, %s97
      %p99 = scmp.eq.s32.totalorder %s31, 0
      %p100 = por %p98, %p99
      %s101 = ssub.s32 %s32, %s44
      %p102 = scmp.eq.s32.totalorder %s101, 0
      %s104 = sadd.s32 %s103, 1
      %s105 = scalar_select %p102, %s103, %s104
      %p108 = pneg %p102
      %p109 = scmp.eq.s32.totalorder %s25, 7
      %p110 = por %p108, %p109
      %p111 = scmp.ne.s32.totalorder %s103, %s106
      %p112 = scmp.eq.s32.totalorder %s25, 0
      %p113 = por %p111, %p112
      %p114 = scmp.ne.s32.totalorder %s103, %s106
      %p115 = scmp.eq.s32.totalorder %s30, 7
      %p116 = por %p114, %p115
      %p117 = scmp.ne.s32.totalorder %s106, %s107
      %p118 = scmp.eq.s32.totalorder %s30, 0
      %p119 = por %p117, %p118
      %p120 = scmp.ne.s32.totalorder %s106, %s107
      %p121 = scmp.eq.s32.totalorder %s31, 7
      %p122 = por %p120, %p121
      %p124 = scmp.ne.s32.totalorder %s107, %s123
      %p125 = scmp.eq.s32.totalorder %s31, 0
      %p126 = por %p124, %p125
      %s127 = ssub.s32 %s32, %s44
      %p128 = scmp.eq.s32.totalorder %s127, 0
      %s130 = sadd.s32 %s129, 1
      %s131 = scalar_select %p128, %s129, %s130
      %p134 = pneg %p128
      %p135 = scmp.eq.s32.totalorder %s25, 7
      %p136 = por %p134, %p135
      %p137 = scmp.ne.s32.totalorder %s129, %s132
      %p138 = scmp.eq.s32.totalorder %s25, 0
      %p139 = por %p137, %p138
      %p140 = scmp.ne.s32.totalorder %s129, %s132
      %p141 = scmp.eq.s32.totalorder %s30, 7
      %p142 = por %p140, %p141
      %p143 = scmp.ne.s32.totalorder %s132, %s133
      %p144 = scmp.eq.s32.totalorder %s30, 0
      %p145 = por %p143, %p144
      %p146 = scmp.ne.s32.totalorder %s132, %s133
      %p147 = scmp.eq.s32.totalorder %s31, 7
      %p148 = por %p146, %p147
      %p150 = scmp.ne.s32.totalorder %s133, %s149
      %p151 = scmp.eq.s32.totalorder %s31, 0
      %p152 = por %p150, %p151
      %s154 = sadd.s32 %s153, 1
      %p157 = scmp.eq.s32.totalorder %s25, 7
      %p158 = scmp.ne.s32.totalorder %s153, %s155
      %p159 = scmp.eq.s32.totalorder %s25, 0
      %p160 = por %p158, %p159
      %p161 = scmp.ne.s32.totalorder %s153, %s155
      %p162 = scmp.eq.s32.totalorder %s30, 7
      %p163 = por %p161, %p162
      %p164 = scmp.ne.s32.totalorder %s155, %s156
      %p165 = scmp.eq.s32.totalorder %s30, 0
      %p166 = por %p164, %p165
      %p167 = scmp.ne.s32.totalorder %s155, %s156
      %p168 = scmp.eq.s32.totalorder %s31, 7
      %p169 = por %p167, %p168
      %p171 = scmp.ne.s32.totalorder %s156, %s170
      %p172 = scmp.eq.s32.totalorder %s31, 0
      %p173 = por %p171, %p172
      %s175 = sadd.s32 %s174, 1
      %p178 = scmp.eq.s32.totalorder %s25, 7
      %p179 = scmp.ne.s32.totalorder %s174, %s176
      %p180 = scmp.eq.s32.totalorder %s25, 0
      %p181 = por %p179, %p180
      %p182 = scmp.ne.s32.totalorder %s174, %s176
      %p183 = scmp.eq.s32.totalorder %s30, 7
      %p184 = por %p182, %p183
      %p185 = scmp.ne.s32.totalorder %s176, %s177
      %p186 = scmp.eq.s32.totalorder %s30, 0
      %p187 = por %p185, %p186
      %p188 = scmp.ne.s32.totalorder %s176, %s177
      %p189 = scmp.eq.s32.totalorder %s31, 7
      %p190 = por %p188, %p189
      %p192 = scmp.ne.s32.totalorder %s177, %s191
      %p193 = scmp.eq.s32.totalorder %s31, 0
      %p194 = por %p192, %p193
      %s195 = ssub.s32 %s32, %s44
      %s196 = ssub.s32 %s33, %s40
      %s197 = sor.u32 %s195, %s196
      %p198 = scmp.eq.s32.totalorder %s197, 0
      %s200 = sadd.s32 %s199, 1
      %s201 = scalar_select %p198, %s199, %s200
      %p204 = pneg %p198
      %p205 = scmp.eq.s32.totalorder %s25, 7
      %p206 = por %p204, %p205
      %p207 = scmp.ne.s32.totalorder %s199, %s202
      %p208 = scmp.eq.s32.totalorder %s25, 0
      %p209 = por %p207, %p208
      %p210 = scmp.ne.s32.totalorder %s199, %s202
      %p211 = scmp.eq.s32.totalorder %s30, 7
      %p212 = por %p210, %p211
      %p213 = scmp.ne.s32.totalorder %s202, %s203
      %p214 = scmp.eq.s32.totalorder %s30, 0
      %p215 = por %p213, %p214
      %p216 = scmp.ne.s32.totalorder %s202, %s203
      %p217 = scmp.eq.s32.totalorder %s31, 7
      %p218 = por %p216, %p217
      %p220 = scmp.ne.s32.totalorder %s203, %s219
      %p221 = scmp.eq.s32.totalorder %s31, 0
      %p222 = por %p220, %p221
      %p223 = scmp.le.s32.totalorder 1, %s25
      %p224 = scmp.lt.s32.totalorder %s25, 9
      %p225 = pnand %p223, %p224
      %p226 = pneg %p225
      // Predicated region
      $region9: #{tpu_custom_call.1} parent=5 // pred_check
        _
      $region10: #{tpu_custom_call.1} parent=5 // pred_check_branch
        %228 = sbr.rel (%p225) target = $region12
      $region11: #{tpu_custom_call.1} parent=5 // pred_region
        %s229 = ssub.s32 %s25, 1
        // Predicated region
        $region13: #{tpu_custom_call.1} parent=11 // pred_check
          %p230 = pneg %p166
        $region14: #{tpu_custom_call.1} parent=11 // pred_check_branch
          %232 = sbr.rel (%p230) target = $region16
        $region15: #{tpu_custom_call.1} parent=11 // pred_region
          %s234 = ssub.s32 256, 256
          %235 = vsyncadd [#allocation9], %s234
          %s236 = sshll.u32 [#allocation10], 4
          %s237 = int_to_ptr.vmem [resolvable:$true] %s236
          %242 = dma.hbm_to_vmem [thread:$0]  %s4, 256, %s237, [#allocation9], 128, 128, 8
        $region16: #{tpu_custom_call.1} parent=11 // pred_fallthru
          _
        // Predicated region
        $region17: #{tpu_custom_call.1} parent=11 // pred_check
          %p243 = pneg %p187
        $region18: #{tpu_custom_call.1} parent=11 // pred_check_branch
          %245 = sbr.rel (%p243) target = $region20
        $region19: #{tpu_custom_call.1} parent=11 // pred_region
          %s247 = ssub.s32 256, 256
          %248 = vsyncadd [#allocation12], %s247
          %s249 = sshll.u32 [#allocation11], 4
          %s250 = int_to_ptr.vmem [resolvable:$true] %s249
          %255 = dma.hbm_to_vmem [thread:$0]  %s5, 256, %s250, [#allocation12], 128, 128, 8
        $region20: #{tpu_custom_call.1} parent=11 // pred_fallthru
          _
      $region12: #{tpu_custom_call.1} parent=5 // pred_fallthru
        _
      %p256 = scmp.lt.s32.totalorder %s25, 8
      // Predicated region
      $region21: #{tpu_custom_call.1} parent=5 // pred_check
        %p257 = pneg %p256
      $region22: #{tpu_custom_call.1} parent=5 // pred_check_branch
        %259 = sbr.rel (%p257) target = $region24
      $region23: #{tpu_custom_call.1} parent=5 // pred_region
        // Predicated region
        $region25: #{tpu_custom_call.1} parent=23 // pred_check
          %p260 = pneg %p59
        $region26: #{tpu_custom_call.1} parent=23 // pred_check_branch
          %262 = sbr.rel (%p260) target = $region28
        $region27: #{tpu_custom_call.1} parent=23 // pred_region
          %s263 = sand.u32 %s49, 1
          %s264 = scalar_lea.sflag [#allocation3], %s263
          %s265 = sand.u32 %s49, 1
          %s266 = smul.addr %s265, 16
          %s267 = scalar_lea.vmem [#allocation2], %s266
          %s269 = ssub.s32 256, 256
          %270 = vsyncadd %s264, %s269
          %s271 = smul.addr %s33, 2
          %s272 = smul.addr %s32, 8
          %s273 = sadd.s32 %s271, %s272
          %s274 = smul.addr %s273, 128
          %s275 = scalar_lea.hbm %s0, %s274
          %s276 = sshll.u32 %s267, 4
          %s277 = int_to_ptr.vmem [resolvable:$true] %s276
          %282 = dma.hbm_to_vmem [thread:$0]  %s275, 256, %s277, %s264, 128, 128, 8
        $region28: #{tpu_custom_call.1} parent=23 // pred_fallthru
          _
        // Predicated region
        $region29: #{tpu_custom_call.1} parent=23 // pred_check
          %p283 = pneg %p87
        $region30: #{tpu_custom_call.1} parent=23 // pred_check_branch
          %285 = sbr.rel (%p283) target = $region32
        $region31: #{tpu_custom_call.1} parent=23 // pred_region
          %s286 = sand.u32 %s25, 1
          %s287 = scalar_lea.sflag [#allocation6], %s286
          %s288 = sand.u32 %s77, 1
          %s289 = smul.addr %s288, 16
          %s290 = scalar_lea.vmem [#allocation5], %s289
          %s292 = ssub.s32 256, 256
          %293 = vsyncadd %s287, %s292
          %s294 = smul.addr %s33, 2
          %s295 = smul.addr %s32, 8
          %s296 = sadd.s32 %s294, %s295
          %s297 = smul.addr %s296, 128
          %s298 = scalar_lea.hbm %s1, %s297
          %s299 = sshll.u32 %s290, 4
          %s300 = int_to_ptr.vmem [resolvable:$true] %s299
          %305 = dma.hbm_to_vmem [thread:$0]  %s298, 256, %s300, %s287, 128, 128, 8
        $region32: #{tpu_custom_call.1} parent=23 // pred_fallthru
          _
        // Predicated region
        $region33: #{tpu_custom_call.1} parent=23 // pred_check
          %p306 = pneg %p113
        $region34: #{tpu_custom_call.1} parent=23 // pred_check_branch
          %308 = sbr.rel (%p306) target = $region36
        $region35: #{tpu_custom_call.1} parent=23 // pred_region
          %s309 = sand.u32 %s25, 1
          %s310 = scalar_lea.sflag [#allocation6], %s309
          %s311 = sand.u32 %s103, 1
          %s312 = smul.addr %s311, 16
          %s313 = scalar_lea.vmem [#allocation7], %s312
          %s315 = ssub.s32 256, 256
          %316 = vsyncadd %s310, %s315
          %s317 = smul.addr %s32, 2
          %s318 = smul.addr %s317, 128
          %s319 = scalar_lea.hbm %s2, %s318
          %s320 = sshll.u32 %s313, 4
          %s321 = int_to_ptr.vmem [resolvable:$true] %s320
          %326 = dma.hbm_to_vmem [thread:$0]  %s319, 256, %s321, %s310, 128, 128, 8
        $region36: #{tpu_custom_call.1} parent=23 // pred_fallthru
          _
        // Predicated region
        $region37: #{tpu_custom_call.1} parent=23 // pred_check
          %p327 = pneg %p139
        $region38: #{tpu_custom_call.1} parent=23 // pred_check_branch
          %329 = sbr.rel (%p327) target = $region40
        $region39: #{tpu_custom_call.1} parent=23 // pred_region
          %s330 = sand.u32 %s25, 1
          %s331 = scalar_lea.sflag [#allocation9], %s330
          %s332 = sand.u32 %s129, 1
          %s333 = smul.addr %s332, 16
          %s334 = scalar_lea.vmem [#allocation8], %s333
          %s336 = ssub.s32 256, 256
          %337 = vsyncadd %s331, %s336
          %s338 = smul.addr %s32, 2
          %s339 = smul.addr %s338, 128
          %s340 = scalar_lea.hbm %s3, %s339
          %s341 = sshll.u32 %s334, 4
          %s342 = int_to_ptr.vmem [resolvable:$true] %s341
          %347 = dma.hbm_to_vmem [thread:$0]  %s340, 256, %s342, %s331, 128, 128, 8
        $region40: #{tpu_custom_call.1} parent=23 // pred_fallthru
          _
      $region24: #{tpu_custom_call.1} parent=5 // pred_fallthru
        _
      %p348 = scmp.le.s32.totalorder 1, %s25
      %p349 = scmp.lt.s32.totalorder %s25, 9
      %p350 = pnand %p348, %p349
      %p351 = pneg %p350
      // Predicated region
      $region41: #{tpu_custom_call.1} parent=5 // pred_check
        _
      $region42: #{tpu_custom_call.1} parent=5 // pred_check_branch
        %353 = sbr.rel (%p350) target = $region44
      $region43: #{tpu_custom_call.1} parent=5 // pred_region
        %s354 = ssub.s32 %s25, 1
        %s355 = sand.u32 %s52, 1
        %s356 = scalar_lea.sflag [#allocation3], %s355
        %s357 = sand.u32 %s52, 1
        %s358 = smul.addr %s357, 16
        %s359 = scalar_lea.vmem [#allocation2], %s358
        // Predicated region
        $region45: #{tpu_custom_call.1} parent=43 // pred_check
          %p360 = pneg %p65
        $region46: #{tpu_custom_call.1} parent=43 // pred_check_branch
          %362 = sbr.rel (%p360) target = $region48
        $region47: #{tpu_custom_call.1} parent=43 // pred_region
          %363 = dma.done %s356, 256
        $region48: #{tpu_custom_call.1} parent=43 // pred_fallthru
          _
        %s364 = sand.u32 %s30, 1
        %s365 = scalar_lea.sflag [#allocation6], %s364
        %s366 = sand.u32 %s80, 1
        %s367 = smul.addr %s366, 16
        %s368 = scalar_lea.vmem [#allocation5], %s367
        // Predicated region
        $region49: #{tpu_custom_call.1} parent=43 // pred_check
          %p369 = pneg %p93
        $region50: #{tpu_custom_call.1} parent=43 // pred_check_branch
          %371 = sbr.rel (%p369) target = $region52
        $region51: #{tpu_custom_call.1} parent=43 // pred_region
          %372 = dma.done %s365, 256
        $region52: #{tpu_custom_call.1} parent=43 // pred_fallthru
          _
        %s373 = sand.u32 %s30, 1
        %s374 = scalar_lea.sflag [#allocation6], %s373
        %s375 = sand.u32 %s106, 1
        %s376 = smul.addr %s375, 16
        %s377 = scalar_lea.vmem [#allocation7], %s376
        // Predicated region
        $region53: #{tpu_custom_call.1} parent=43 // pred_check
          %p378 = pneg %p119
        $region54: #{tpu_custom_call.1} parent=43 // pred_check_branch
          %380 = sbr.rel (%p378) target = $region56
        $region55: #{tpu_custom_call.1} parent=43 // pred_region
          %381 = dma.done %s374, 256
        $region56: #{tpu_custom_call.1} parent=43 // pred_fallthru
          _
        %s382 = sand.u32 %s30, 1
        %s383 = scalar_lea.sflag [#allocation9], %s382
        %s384 = sand.u32 %s132, 1
        %s385 = smul.addr %s384, 16
        %s386 = scalar_lea.vmem [#allocation8], %s385
        // Predicated region
        $region57: #{tpu_custom_call.1} parent=43 // pred_check
          %p387 = pneg %p145
        $region58: #{tpu_custom_call.1} parent=43 // pred_check_branch
          %389 = sbr.rel (%p387) target = $region60
        $region59: #{tpu_custom_call.1} parent=43 // pred_region
          %390 = dma.done %s383, 256
        $region60: #{tpu_custom_call.1} parent=43 // pred_fallthru
          _
        // Predicated region
        $region61: #{tpu_custom_call.1} parent=43 // pred_check
          %p391 = pneg %p166
        $region62: #{tpu_custom_call.1} parent=43 // pred_check_branch
          %393 = sbr.rel (%p391) target = $region64
        $region63: #{tpu_custom_call.1} parent=43 // pred_region
          %394 = dma.done [#allocation9], 256
        $region64: #{tpu_custom_call.1} parent=43 // pred_fallthru
          _
        // Predicated region
        $region65: #{tpu_custom_call.1} parent=43 // pred_check
          %p395 = pneg %p187
        $region66: #{tpu_custom_call.1} parent=43 // pred_check_branch
          %397 = sbr.rel (%p395) target = $region68
        $region67: #{tpu_custom_call.1} parent=43 // pred_region
          %398 = dma.done [#allocation12], 256
        $region68: #{tpu_custom_call.1} parent=43 // pred_fallthru
          _
        %s399 = sand.u32 %s52, 1
        %s400 = scalar_lea.sflag [#allocation3], %s399
        %s401 = sand.u32 %s52, 1
        %s402 = smul.addr %s401, 16
        %s403 = scalar_lea.vmem [#allocation2], %s402
        %p404 = pneg %p65
        %p405 = pneg %p62
        %s406 = sand.u32 %s30, 1
        %s407 = scalar_lea.sflag [#allocation6], %s406
        %s408 = sand.u32 %s80, 1
        %s409 = smul.addr %s408, 16
        %s410 = scalar_lea.vmem [#allocation5], %s409
        %p411 = pneg %p93
        %p412 = pneg %p90
        %s413 = sand.u32 %s30, 1
        %s414 = scalar_lea.sflag [#allocation6], %s413
        %s415 = sand.u32 %s106, 1
        %s416 = smul.addr %s415, 16
        %s417 = scalar_lea.vmem [#allocation7], %s416
        %p418 = pneg %p119
        %p419 = pneg %p116
        %s420 = sand.u32 %s30, 1
        %s421 = scalar_lea.sflag [#allocation9], %s420
        %s422 = sand.u32 %s132, 1
        %s423 = smul.addr %s422, 16
        %s424 = scalar_lea.vmem [#allocation8], %s423
        %p425 = pneg %p145
        %p426 = pneg %p142
        %p427 = pneg %p166
        %p428 = pneg %p163
        %p429 = pneg %p187
        %p430 = pneg %p184
        %p431 = pneg %p215
        %p432 = pneg %p212
        %s433 = sand.u32 %s202, 1
        %s434 = scalar_lea.sflag [#allocation4], %s433
        %s435 = sand.u32 %s202, 1
        %s436 = smul.addr %s435, 8
        %s437 = scalar_lea.vmem [#allocation13], %s436
        %v438 = vld [vmem:[%s359] sm:$0xff]
        %v439 = vld [vmem:[%s359 + $0x8] sm:$0xff]
        %v440 = vld [vmem:[%s368] sm:$0xff]
        %v441 = vld [vmem:[%s368 + $0x8] sm:$0xff]
        %v442 = vld [vmem:[%s377] sm:$0xff]
        %v443 = vld [vmem:[%s377 + $0x8] sm:$0xff]
        %vm444 = vcmp.ne.f32.partialorder %v442, 0.0
        %vm445 = vcmp.ne.f32.partialorder %v443, 0.0
        %v446 = vld [vmem:[%s386] sm:$0xff]
        %v447 = vld [vmem:[%s386 + $0x8] sm:$0xff]
        %vm448 = vcmp.ne.f32.partialorder %v446, 0.0
        %vm449 = vcmp.ne.f32.partialorder %v447, 0.0
        %v450 = vld [vmem:[#allocation10] sm:$0xff]
        %v451 = vld [vmem:[#allocation10 + $0x8] sm:$0xff]
        %v452 = vld [vmem:[#allocation11] sm:$0xff]
        %v453 = vld [vmem:[#allocation11 + $0x8] sm:$0xff]
        %vm454 = vmxor %vm448, 1
        %vm455 = vmxor %vm449, 1
        %vm456 = vmxor %vm444, %vm448
        %vm457 = vmxor %vm445, %vm449
        %v458 = vsel %vm454, %v438, 0.0
        %v459 = vsel %vm455, %v439, 0.0
        %v460 = vsel %vm454, %v440, 0.0
        %v461 = vsel %vm455, %v441, 0.0
        %v462 = vsel %vm456, %v438, 0.0
        %v463 = vsel %vm457, %v439, 0.0
        %v464 = vsel %vm456, %v440, 0.0
        %v465 = vsel %vm457, %v441, 0.0
        %v466 = vsub.f32 %v458, %v460
        %v467 = vsub.f32 %v459, %v461
        %v468 = vsub.f32 %v462, %v464
        %v469 = vsub.f32 %v463, %v465
        %v470 = vand.u32 2147483647, %v466
        %v471 = vand.u32 2147483647, %v467
        %vm472 = vcmask 130048
        %v473 = vsel %vm472, %v470, 0.0
        %v474 = vsel %vm472, %v471, 0.0
        %v475 = vadd.f32 %v473, %v474
        %476 = vadd.xlane.f32.xlu0 %v475
        %v477 = vpop.xlane.xlu0 %476
        %v478 = vrot.slane %v477, 4
        %v479 = vadd.f32 %v477, %v478
        %v480 = vrot.slane %v479, 2
        %v481 = vadd.f32 %v479, %v480
        %v482 = vrot.slane %v481, 1
        %v483 = vadd.f32 %v481, %v482
        %s484 = vtos %v483
        %v485 = vand.u32 2147483647, %v468
        %v486 = vand.u32 2147483647, %v469
        %v487 = vsel %vm472, %v485, 0.0
        %v488 = vsel %vm472, %v486, 0.0
        %v489 = vadd.f32 %v487, %v488
        %490 = vadd.xlane.f32.xlu0 %v489
        %v491 = vpop.xlane.xlu0 %490
        %v492 = vrot.slane %v491, 4
        %v493 = vadd.f32 %v491, %v492
        %v494 = vrot.slane %v493, 2
        %v495 = vadd.f32 %v493, %v494
        %v496 = vrot.slane %v495, 1
        %v497 = vadd.f32 %v495, %v496
        %s498 = vtos %v497
        %v499 = vmul.f32 %v466, %v466
        %v500 = vmul.f32 %v467, %v467
        %v501 = vsel %vm472, %v499, 0.0
        %v502 = vsel %vm472, %v500, 0.0
        %v503 = vadd.f32 %v501, %v502
        %504 = vadd.xlane.f32.xlu0 %v503
        %v505 = vpop.xlane.xlu0 %504
        %v506 = vrot.slane %v505, 4
        %v507 = vadd.f32 %v505, %v506
        %v508 = vrot.slane %v507, 2
        %v509 = vadd.f32 %v507, %v508
        %v510 = vrot.slane %v509, 1
        %v511 = vadd.f32 %v509, %v510
        %s512 = vtos %v511
        %v513 = vmul.f32 %v468, %v468
        %v514 = vmul.f32 %v469, %v469
        %v515 = vsel %vm472, %v513, 0.0
        %v516 = vsel %vm472, %v514, 0.0
        %v517 = vadd.f32 %v515, %v516
        %518 = vadd.xlane.f32.xlu0 %v517
        %v519 = vpop.xlane.xlu0 %518
        %v520 = vrot.slane %v519, 4
        %v521 = vadd.f32 %v519, %v520
        %v522 = vrot.slane %v521, 2
        %v523 = vadd.f32 %v521, %v522
        %v524 = vrot.slane %v523, 1
        %v525 = vadd.f32 %v523, %v524
        %s526 = vtos %v525
        %v528 = vsel %vm472, %v458, 0
        %v531 = vsel %vm472, %v459, 0
        %533 = vmatprep.subr.mxu0 0.0
        %534 = vmatpush1.msra.mxu0 0.0
        %535 = vmatprep.subr.mxu0 0.0
        %536 = vmatpush1.msra.mxu0 0.0
        %537 = vmatprep.subr.mxu0 0.0
        %538 = vmatpush1.msra.mxu0 0.0
        %539 = vmatprep.subr.mxu0 0.0
        %540 = vmatpush1.msra.mxu0 0.0
        %541 = vmatprep.subr.mxu0 0.0
        %542 = vmatpush1.msra.mxu0 0.0
        %543 = vmatprep.subr.mxu0 0.0
        %544 = vmatpush1.msra.mxu0 0.0
        %545 = vmatprep.subr.mxu0 0.0
        %546 = vmatpush1.msra.mxu0 0.0
        %547 = vmatprep.subr.mxu0 0.0
        %548 = vmatpush1.msra.mxu0 0.0
        %549 = vmatprep.subr.mxu0 0.0
        %550 = vmatpush1.msra.mxu0 0.0
        %551 = vmatprep.subr.mxu0 0.0
        %552 = vmatpush1.msra.mxu0 0.0
        %553 = vmatprep.subr.mxu0 0.0
        %554 = vmatpush1.msra.mxu0 0.0
        %555 = vmatprep.subr.mxu0 0.0
        %556 = vmatpush1.msra.mxu0 0.0
        %557 = vmatprep.subr.mxu0 0.0
        %558 = vmatpush1.msra.mxu0 0.0
        %559 = vmatprep.subr.mxu0 0.0
        %560 = vmatpush1.msra.mxu0 0.0
        %561 = vmatprep.subr.mxu0 0.0
        %562 = vmatpush1.msra.mxu0 %v451
        %563 = vmatprep.subr.mxu0 0.0
        %564 = vmatpush1.msra.mxu0 %v450
        %565 = vmatprep.subr.mxu0 0.0
        %566 = vmatpush2.msra.mxu0 0.0
        %567 = vmatprep.subr.mxu0 0.0
        %568 = vmatpush2.msra.mxu0 0.0
        %569 = vmatprep.subr.mxu0 0.0
        %570 = vmatpush2.msra.mxu0 0.0
        %571 = vmatprep.subr.mxu0 0.0
        %572 = vmatpush2.msra.mxu0 0.0
        %573 = vmatprep.subr.mxu0 0.0
        %574 = vmatpush2.msra.mxu0 0.0
        %575 = vmatprep.subr.mxu0 0.0
        %576 = vmatpush2.msra.mxu0 0.0
        %577 = vmatprep.subr.mxu0 0.0
        %578 = vmatpush2.msra.mxu0 0.0
        %579 = vmatprep.subr.mxu0 0.0
        %580 = vmatpush2.msra.mxu0 0.0
        %581 = vmatprep.subr.mxu0 0.0
        %582 = vmatpush2.msra.mxu0 0.0
        %583 = vmatprep.subr.mxu0 0.0
        %584 = vmatpush2.msra.mxu0 0.0
        %585 = vmatprep.subr.mxu0 0.0
        %586 = vmatpush2.msra.mxu0 0.0
        %587 = vmatprep.subr.mxu0 0.0
        %588 = vmatpush2.msra.mxu0 0.0
        %589 = vmatprep.subr.mxu0 0.0
        %590 = vmatpush2.msra.mxu0 0.0
        %591 = vmatprep.subr.mxu0 0.0
        %592 = vmatpush2.msra.mxu0 0.0
        %593 = vmatprep.subr.mxu0 0.0
        %594 = vmatpush2.msra.mxu0 0.0
        %595 = vmatprep.subr.mxu0 0.0
        %596 = vmatpush2.msra.mxu0 0.0
        %597 = vmatprep.mubr.f32.mxu0 0.0
        %598 = vmatmul.mubr.f32.gmra.mxu0 %v528
        %v599 = vpop.f32.mrf.mxu0
        %v600 = vadd.f32 0.0, %v599
        %v601 = vpop.f32.mrf.mxu0
        %602 = vmatprep.mubr.f32.mxu0 0.0
        %603 = vmatmul.mubr.f32.gmra.mxu0 %v531
        %v604 = vpop.f32.mrf.mxu0
        %v605 = vadd.f32 0.0, %v604
        %v606 = vpop.f32.mrf.mxu0
        %607 = vdwg.mxu0
        %v609 = vsel %vm472, %v452, 0
        %v612 = vsel %vm472, %v453, 0
        %614 = vmatprep.subr.mxu0 0.0
        %615 = vmatpush1.msra.mxu0 0.0
        %616 = vmatprep.subr.mxu0 0.0
        %617 = vmatpush1.msra.mxu0 0.0
        %618 = vmatprep.subr.mxu0 0.0
        %619 = vmatpush1.msra.mxu0 0.0
        %620 = vmatprep.subr.mxu0 0.0
        %621 = vmatpush1.msra.mxu0 0.0
        %622 = vmatprep.subr.mxu0 0.0
        %623 = vmatpush1.msra.mxu0 0.0
        %624 = vmatprep.subr.mxu0 0.0
        %625 = vmatpush1.msra.mxu0 0.0
        %626 = vmatprep.subr.mxu0 0.0
        %627 = vmatpush1.msra.mxu0 0.0
        %628 = vmatprep.subr.mxu0 0.0
        %629 = vmatpush1.msra.mxu0 0.0
        %630 = vmatprep.subr.mxu0 0.0
        %631 = vmatpush1.msra.mxu0 0.0
        %632 = vmatprep.subr.mxu0 0.0
        %633 = vmatpush1.msra.mxu0 0.0
        %634 = vmatprep.subr.mxu0 0.0
        %635 = vmatpush1.msra.mxu0 0.0
        %636 = vmatprep.subr.mxu0 0.0
        %637 = vmatpush1.msra.mxu0 0.0
        %638 = vmatprep.subr.mxu0 0.0
        %639 = vmatpush1.msra.mxu0 0.0
        %640 = vmatprep.subr.mxu0 0.0
        %641 = vmatpush1.msra.mxu0 0.0
        %642 = vmatprep.subr.mxu0 0.0
        %643 = vmatpush1.msra.mxu0 %v605
        %644 = vmatprep.subr.mxu0 0.0
        %645 = vmatpush1.msra.mxu0 %v600
        %646 = vmatprep.subr.mxu0 0.0
        %647 = vmatpush2.msra.mxu0 0.0
        %648 = vmatprep.subr.mxu0 0.0
        %649 = vmatpush2.msra.mxu0 0.0
        %650 = vmatprep.subr.mxu0 0.0
        %651 = vmatpush2.msra.mxu0 0.0
        %652 = vmatprep.subr.mxu0 0.0
        %653 = vmatpush2.msra.mxu0 0.0
        %654 = vmatprep.subr.mxu0 0.0
        %655 = vmatpush2.msra.mxu0 0.0
        %656 = vmatprep.subr.mxu0 0.0
        %657 = vmatpush2.msra.mxu0 0.0
        %658 = vmatprep.subr.mxu0 0.0
        %659 = vmatpush2.msra.mxu0 0.0
        %660 = vmatprep.subr.mxu0 0.0
        %661 = vmatpush2.msra.mxu0 0.0
        %662 = vmatprep.subr.mxu0 0.0
        %663 = vmatpush2.msra.mxu0 0.0
        %664 = vmatprep.subr.mxu0 0.0
        %665 = vmatpush2.msra.mxu0 0.0
        %666 = vmatprep.subr.mxu0 0.0
        %667 = vmatpush2.msra.mxu0 0.0
        %668 = vmatprep.subr.mxu0 0.0
        %669 = vmatpush2.msra.mxu0 0.0
        %670 = vmatprep.subr.mxu0 0.0
        %671 = vmatpush2.msra.mxu0 0.0
        %672 = vmatprep.subr.mxu0 0.0
        %673 = vmatpush2.msra.mxu0 0.0
        %674 = vmatprep.subr.mxu0 0.0
        %675 = vmatpush2.msra.mxu0 0.0
        %676 = vmatprep.subr.mxu0 0.0
        %677 = vmatpush2.msra.mxu0 0.0
        %678 = vmatprep.mubr.f32.mxu0 0.0
        %679 = vmatmul.mubr.f32.gmra.mxu0 %v609
        %v680 = vpop.f32.mrf.mxu0
        %v681 = vadd.f32 0.0, %v680
        %v682 = vpop.f32.mrf.mxu0
        %683 = vmatprep.mubr.f32.mxu0 0.0
        %684 = vmatmul.mubr.f32.gmra.mxu0 %v612
        %v685 = vpop.f32.mrf.mxu0
        %v686 = vadd.f32 0.0, %v685
        %v687 = vpop.f32.mrf.mxu0
        %688 = vdwg.mxu0
        %v690 = vsel %vm472, %v460, 0
        %v693 = vsel %vm472, %v461, 0
        %695 = vmatprep.subr.mxu0 0.0
        %696 = vmatpush1.msra.mxu0 0.0
        %697 = vmatprep.subr.mxu0 0.0
        %698 = vmatpush1.msra.mxu0 0.0
        %699 = vmatprep.subr.mxu0 0.0
        %700 = vmatpush1.msra.mxu0 0.0
        %701 = vmatprep.subr.mxu0 0.0
        %702 = vmatpush1.msra.mxu0 0.0
        %703 = vmatprep.subr.mxu0 0.0
        %704 = vmatpush1.msra.mxu0 0.0
        %705 = vmatprep.subr.mxu0 0.0
        %706 = vmatpush1.msra.mxu0 0.0
        %707 = vmatprep.subr.mxu0 0.0
        %708 = vmatpush1.msra.mxu0 0.0
        %709 = vmatprep.subr.mxu0 0.0
        %710 = vmatpush1.msra.mxu0 0.0
        %711 = vmatprep.subr.mxu0 0.0
        %712 = vmatpush1.msra.mxu0 0.0
        %713 = vmatprep.subr.mxu0 0.0
        %714 = vmatpush1.msra.mxu0 0.0
        %715 = vmatprep.subr.mxu0 0.0
        %716 = vmatpush1.msra.mxu0 0.0
        %717 = vmatprep.subr.mxu0 0.0
        %718 = vmatpush1.msra.mxu0 0.0
        %719 = vmatprep.subr.mxu0 0.0
        %720 = vmatpush1.msra.mxu0 0.0
        %721 = vmatprep.subr.mxu0 0.0
        %722 = vmatpush1.msra.mxu0 0.0
        %723 = vmatprep.subr.mxu0 0.0
        %724 = vmatpush1.msra.mxu0 %v451
        %725 = vmatprep.subr.mxu0 0.0
        %726 = vmatpush1.msra.mxu0 %v450
        %727 = vmatprep.subr.mxu0 0.0
        %728 = vmatpush2.msra.mxu0 0.0
        %729 = vmatprep.subr.mxu0 0.0
        %730 = vmatpush2.msra.mxu0 0.0
        %731 = vmatprep.subr.mxu0 0.0
        %732 = vmatpush2.msra.mxu0 0.0
        %733 = vmatprep.subr.mxu0 0.0
        %734 = vmatpush2.msra.mxu0 0.0
        %735 = vmatprep.subr.mxu0 0.0
        %736 = vmatpush2.msra.mxu0 0.0
        %737 = vmatprep.subr.mxu0 0.0
        %738 = vmatpush2.msra.mxu0 0.0
        %739 = vmatprep.subr.mxu0 0.0
        %740 = vmatpush2.msra.mxu0 0.0
        %741 = vmatprep.subr.mxu0 0.0
        %742 = vmatpush2.msra.mxu0 0.0
        %743 = vmatprep.subr.mxu0 0.0
        %744 = vmatpush2.msra.mxu0 0.0
        %745 = vmatprep.subr.mxu0 0.0
        %746 = vmatpush2.msra.mxu0 0.0
        %747 = vmatprep.subr.mxu0 0.0
        %748 = vmatpush2.msra.mxu0 0.0
        %749 = vmatprep.subr.mxu0 0.0
        %750 = vmatpush2.msra.mxu0 0.0
        %751 = vmatprep.subr.mxu0 0.0
        %752 = vmatpush2.msra.mxu0 0.0
        %753 = vmatprep.subr.mxu0 0.0
        %754 = vmatpush2.msra.mxu0 0.0
        %755 = vmatprep.subr.mxu0 0.0
        %756 = vmatpush2.msra.mxu0 0.0
        %757 = vmatprep.subr.mxu0 0.0
        %758 = vmatpush2.msra.mxu0 0.0
        %759 = vmatprep.mubr.f32.mxu0 0.0
        %760 = vmatmul.mubr.f32.gmra.mxu0 %v690
        %v761 = vpop.f32.mrf.mxu0
        %v762 = vadd.f32 0.0, %v761
        %v763 = vpop.f32.mrf.mxu0
        %764 = vmatprep.mubr.f32.mxu0 0.0
        %765 = vmatmul.mubr.f32.gmra.mxu0 %v693
        %v766 = vpop.f32.mrf.mxu0
        %v767 = vadd.f32 0.0, %v766
        %v768 = vpop.f32.mrf.mxu0
        %769 = vdwg.mxu0
        %770 = vmatprep.subr.mxu0 0.0
        %771 = vmatpush1.msra.mxu0 0.0
        %772 = vmatprep.subr.mxu0 0.0
        %773 = vmatpush1.msra.mxu0 0.0
        %774 = vmatprep.subr.mxu0 0.0
        %775 = vmatpush1.msra.mxu0 0.0
        %776 = vmatprep.subr.mxu0 0.0
        %777 = vmatpush1.msra.mxu0 0.0
        %778 = vmatprep.subr.mxu0 0.0
        %779 = vmatpush1.msra.mxu0 0.0
        %780 = vmatprep.subr.mxu0 0.0
        %781 = vmatpush1.msra.mxu0 0.0
        %782 = vmatprep.subr.mxu0 0.0
        %783 = vmatpush1.msra.mxu0 0.0
        %784 = vmatprep.subr.mxu0 0.0
        %785 = vmatpush1.msra.mxu0 0.0
        %786 = vmatprep.subr.mxu0 0.0
        %787 = vmatpush1.msra.mxu0 0.0
        %788 = vmatprep.subr.mxu0 0.0
        %789 = vmatpush1.msra.mxu0 0.0
        %790 = vmatprep.subr.mxu0 0.0
        %791 = vmatpush1.msra.mxu0 0.0
        %792 = vmatprep.subr.mxu0 0.0
        %793 = vmatpush1.msra.mxu0 0.0
        %794 = vmatprep.subr.mxu0 0.0
        %795 = vmatpush1.msra.mxu0 0.0
        %796 = vmatprep.subr.mxu0 0.0
        %797 = vmatpush1.msra.mxu0 0.0
        %798 = vmatprep.subr.mxu0 0.0
        %799 = vmatpush1.msra.mxu0 %v767
        %800 = vmatprep.subr.mxu0 0.0
        %801 = vmatpush1.msra.mxu0 %v762
        %802 = vmatprep.subr.mxu0 0.0
        %803 = vmatpush2.msra.mxu0 0.0
        %804 = vmatprep.subr.mxu0 0.0
        %805 = vmatpush2.msra.mxu0 0.0
        %806 = vmatprep.subr.mxu0 0.0
        %807 = vmatpush2.msra.mxu0 0.0
        %808 = vmatprep.subr.mxu0 0.0
        %809 = vmatpush2.msra.mxu0 0.0
        %810 = vmatprep.subr.mxu0 0.0
        %811 = vmatpush2.msra.mxu0 0.0
        %812 = vmatprep.subr.mxu0 0.0
        %813 = vmatpush2.msra.mxu0 0.0
        %814 = vmatprep.subr.mxu0 0.0
        %815 = vmatpush2.msra.mxu0 0.0
        %816 = vmatprep.subr.mxu0 0.0
        %817 = vmatpush2.msra.mxu0 0.0
        %818 = vmatprep.subr.mxu0 0.0
        %819 = vmatpush2.msra.mxu0 0.0
        %820 = vmatprep.subr.mxu0 0.0
        %821 = vmatpush2.msra.mxu0 0.0
        %822 = vmatprep.subr.mxu0 0.0
        %823 = vmatpush2.msra.mxu0 0.0
        %824 = vmatprep.subr.mxu0 0.0
        %825 = vmatpush2.msra.mxu0 0.0
        %826 = vmatprep.subr.mxu0 0.0
        %827 = vmatpush2.msra.mxu0 0.0
        %828 = vmatprep.subr.mxu0 0.0
        %829 = vmatpush2.msra.mxu0 0.0
        %830 = vmatprep.subr.mxu0 0.0
        %831 = vmatpush2.msra.mxu0 0.0
        %832 = vmatprep.subr.mxu0 0.0
        %833 = vmatpush2.msra.mxu0 0.0
        %834 = vmatprep.mubr.f32.mxu0 0.0
        %835 = vmatmul.mubr.f32.gmra.mxu0 %v609
        %v836 = vpop.f32.mrf.mxu0
        %v837 = vadd.f32 0.0, %v836
        %v838 = vpop.f32.mrf.mxu0
        %839 = vmatprep.mubr.f32.mxu0 0.0
        %840 = vmatmul.mubr.f32.gmra.mxu0 %v612
        %v841 = vpop.f32.mrf.mxu0
        %v842 = vadd.f32 0.0, %v841
        %v843 = vpop.f32.mrf.mxu0
        %844 = vdwg.mxu0
        %v845 = vmul.f32 %v458, %v458
        %v846 = vmul.f32 %v459, %v459
        %v848 = vsel %vm472, %v845, 0
        %v851 = vsel %vm472, %v846, 0
        %853 = vmatprep.subr.mxu0 0.0
        %854 = vmatpush1.msra.mxu0 0.0
        %855 = vmatprep.subr.mxu0 0.0
        %856 = vmatpush1.msra.mxu0 0.0
        %857 = vmatprep.subr.mxu0 0.0
        %858 = vmatpush1.msra.mxu0 0.0
        %859 = vmatprep.subr.mxu0 0.0
        %860 = vmatpush1.msra.mxu0 0.0
        %861 = vmatprep.subr.mxu0 0.0
        %862 = vmatpush1.msra.mxu0 0.0
        %863 = vmatprep.subr.mxu0 0.0
        %864 = vmatpush1.msra.mxu0 0.0
        %865 = vmatprep.subr.mxu0 0.0
        %866 = vmatpush1.msra.mxu0 0.0
        %867 = vmatprep.subr.mxu0 0.0
        %868 = vmatpush1.msra.mxu0 0.0
        %869 = vmatprep.subr.mxu0 0.0
        %870 = vmatpush1.msra.mxu0 0.0
        %871 = vmatprep.subr.mxu0 0.0
        %872 = vmatpush1.msra.mxu0 0.0
        %873 = vmatprep.subr.mxu0 0.0
        %874 = vmatpush1.msra.mxu0 0.0
        %875 = vmatprep.subr.mxu0 0.0
        %876 = vmatpush1.msra.mxu0 0.0
        %877 = vmatprep.subr.mxu0 0.0
        %878 = vmatpush1.msra.mxu0 0.0
        %879 = vmatprep.subr.mxu0 0.0
        %880 = vmatpush1.msra.mxu0 0.0
        %881 = vmatprep.subr.mxu0 0.0
        %882 = vmatpush1.msra.mxu0 %v451
        %883 = vmatprep.subr.mxu0 0.0
        %884 = vmatpush1.msra.mxu0 %v450
        %885 = vmatprep.subr.mxu0 0.0
        %886 = vmatpush2.msra.mxu0 0.0
        %887 = vmatprep.subr.mxu0 0.0
        %888 = vmatpush2.msra.mxu0 0.0
        %889 = vmatprep.subr.mxu0 0.0
        %890 = vmatpush2.msra.mxu0 0.0
        %891 = vmatprep.subr.mxu0 0.0
        %892 = vmatpush2.msra.mxu0 0.0
        %893 = vmatprep.subr.mxu0 0.0
        %894 = vmatpush2.msra.mxu0 0.0
        %895 = vmatprep.subr.mxu0 0.0
        %896 = vmatpush2.msra.mxu0 0.0
        %897 = vmatprep.subr.mxu0 0.0
        %898 = vmatpush2.msra.mxu0 0.0
        %899 = vmatprep.subr.mxu0 0.0
        %900 = vmatpush2.msra.mxu0 0.0
        %901 = vmatprep.subr.mxu0 0.0
        %902 = vmatpush2.msra.mxu0 0.0
        %903 = vmatprep.subr.mxu0 0.0
        %904 = vmatpush2.msra.mxu0 0.0
        %905 = vmatprep.subr.mxu0 0.0
        %906 = vmatpush2.msra.mxu0 0.0
        %907 = vmatprep.subr.mxu0 0.0
        %908 = vmatpush2.msra.mxu0 0.0
        %909 = vmatprep.subr.mxu0 0.0
        %910 = vmatpush2.msra.mxu0 0.0
        %911 = vmatprep.subr.mxu0 0.0
        %912 = vmatpush2.msra.mxu0 0.0
        %913 = vmatprep.subr.mxu0 0.0
        %914 = vmatpush2.msra.mxu0 0.0
        %915 = vmatprep.subr.mxu0 0.0
        %916 = vmatpush2.msra.mxu0 0.0
        %917 = vmatprep.mubr.f32.mxu0 0.0
        %918 = vmatmul.mubr.f32.gmra.mxu0 %v848
        %v919 = vpop.f32.mrf.mxu0
        %v920 = vadd.f32 0.0, %v919
        %v921 = vpop.f32.mrf.mxu0
        %922 = vmatprep.mubr.f32.mxu0 0.0
        %923 = vmatmul.mubr.f32.gmra.mxu0 %v851
        %v924 = vpop.f32.mrf.mxu0
        %v925 = vadd.f32 0.0, %v924
        %v926 = vpop.f32.mrf.mxu0
        %927 = vdwg.mxu0
        %928 = vmatprep.subr.mxu0 0.0
        %929 = vmatpush1.msra.mxu0 0.0
        %930 = vmatprep.subr.mxu0 0.0
        %931 = vmatpush1.msra.mxu0 0.0
        %932 = vmatprep.subr.mxu0 0.0
        %933 = vmatpush1.msra.mxu0 0.0
        %934 = vmatprep.subr.mxu0 0.0
        %935 = vmatpush1.msra.mxu0 0.0
        %936 = vmatprep.subr.mxu0 0.0
        %937 = vmatpush1.msra.mxu0 0.0
        %938 = vmatprep.subr.mxu0 0.0
        %939 = vmatpush1.msra.mxu0 0.0
        %940 = vmatprep.subr.mxu0 0.0
        %941 = vmatpush1.msra.mxu0 0.0
        %942 = vmatprep.subr.mxu0 0.0
        %943 = vmatpush1.msra.mxu0 0.0
        %944 = vmatprep.subr.mxu0 0.0
        %945 = vmatpush1.msra.mxu0 0.0
        %946 = vmatprep.subr.mxu0 0.0
        %947 = vmatpush1.msra.mxu0 0.0
        %948 = vmatprep.subr.mxu0 0.0
        %949 = vmatpush1.msra.mxu0 0.0
        %950 = vmatprep.subr.mxu0 0.0
        %951 = vmatpush1.msra.mxu0 0.0
        %952 = vmatprep.subr.mxu0 0.0
        %953 = vmatpush1.msra.mxu0 0.0
        %954 = vmatprep.subr.mxu0 0.0
        %955 = vmatpush1.msra.mxu0 0.0
        %956 = vmatprep.subr.mxu0 0.0
        %957 = vmatpush1.msra.mxu0 %v925
        %958 = vmatprep.subr.mxu0 0.0
        %959 = vmatpush1.msra.mxu0 %v920
        %960 = vmatprep.subr.mxu0 0.0
        %961 = vmatpush2.msra.mxu0 0.0
        %962 = vmatprep.subr.mxu0 0.0
        %963 = vmatpush2.msra.mxu0 0.0
        %964 = vmatprep.subr.mxu0 0.0
        %965 = vmatpush2.msra.mxu0 0.0
        %966 = vmatprep.subr.mxu0 0.0
        %967 = vmatpush2.msra.mxu0 0.0
        %968 = vmatprep.subr.mxu0 0.0
        %969 = vmatpush2.msra.mxu0 0.0
        %970 = vmatprep.subr.mxu0 0.0
        %971 = vmatpush2.msra.mxu0 0.0
        %972 = vmatprep.subr.mxu0 0.0
        %973 = vmatpush2.msra.mxu0 0.0
        %974 = vmatprep.subr.mxu0 0.0
        %975 = vmatpush2.msra.mxu0 0.0
        %976 = vmatprep.subr.mxu0 0.0
        %977 = vmatpush2.msra.mxu0 0.0
        %978 = vmatprep.subr.mxu0 0.0
        %979 = vmatpush2.msra.mxu0 0.0
        %980 = vmatprep.subr.mxu0 0.0
        %981 = vmatpush2.msra.mxu0 0.0
        %982 = vmatprep.subr.mxu0 0.0
        %983 = vmatpush2.msra.mxu0 0.0
        %984 = vmatprep.subr.mxu0 0.0
        %985 = vmatpush2.msra.mxu0 0.0
        %986 = vmatprep.subr.mxu0 0.0
        %987 = vmatpush2.msra.mxu0 0.0
        %988 = vmatprep.subr.mxu0 0.0
        %989 = vmatpush2.msra.mxu0 0.0
        %990 = vmatprep.subr.mxu0 0.0
        %991 = vmatpush2.msra.mxu0 0.0
        %992 = vmatprep.mubr.f32.mxu0 0.0
        %993 = vmatmul.mubr.f32.gmra.mxu0 %v609
        %v994 = vpop.f32.mrf.mxu0
        %v995 = vadd.f32 0.0, %v994
        %v996 = vpop.f32.mrf.mxu0
        %997 = vmatprep.mubr.f32.mxu0 0.0
        %998 = vmatmul.mubr.f32.gmra.mxu0 %v612
        %v999 = vpop.f32.mrf.mxu0
        %v1000 = vadd.f32 0.0, %v999
        %v1001 = vpop.f32.mrf.mxu0
        %1002 = vdwg.mxu0
        %v1003 = vmul.f32 %v460, %v460
        %v1004 = vmul.f32 %v461, %v461
        %v1006 = vsel %vm472, %v1003, 0
        %v1009 = vsel %vm472, %v1004, 0
        %1011 = vmatprep.subr.mxu0 0.0
        %1012 = vmatpush1.msra.mxu0 0.0
        %1013 = vmatprep.subr.mxu0 0.0
        %1014 = vmatpush1.msra.mxu0 0.0
        %1015 = vmatprep.subr.mxu0 0.0
        %1016 = vmatpush1.msra.mxu0 0.0
        %1017 = vmatprep.subr.mxu0 0.0
        %1018 = vmatpush1.msra.mxu0 0.0
        %1019 = vmatprep.subr.mxu0 0.0
        %1020 = vmatpush1.msra.mxu0 0.0
        %1021 = vmatprep.subr.mxu0 0.0
        %1022 = vmatpush1.msra.mxu0 0.0
        %1023 = vmatprep.subr.mxu0 0.0
        %1024 = vmatpush1.msra.mxu0 0.0
        %1025 = vmatprep.subr.mxu0 0.0
        %1026 = vmatpush1.msra.mxu0 0.0
        %1027 = vmatprep.subr.mxu0 0.0
        %1028 = vmatpush1.msra.mxu0 0.0
        %1029 = vmatprep.subr.mxu0 0.0
        %1030 = vmatpush1.msra.mxu0 0.0
        %1031 = vmatprep.subr.mxu0 0.0
        %1032 = vmatpush1.msra.mxu0 0.0
        %1033 = vmatprep.subr.mxu0 0.0
        %1034 = vmatpush1.msra.mxu0 0.0
        %1035 = vmatprep.subr.mxu0 0.0
        %1036 = vmatpush1.msra.mxu0 0.0
        %1037 = vmatprep.subr.mxu0 0.0
        %1038 = vmatpush1.msra.mxu0 0.0
        %1039 = vmatprep.subr.mxu0 0.0
        %1040 = vmatpush1.msra.mxu0 %v451
        %1041 = vmatprep.subr.mxu0 0.0
        %1042 = vmatpush1.msra.mxu0 %v450
        %1043 = vmatprep.subr.mxu0 0.0
        %1044 = vmatpush2.msra.mxu0 0.0
        %1045 = vmatprep.subr.mxu0 0.0
        %1046 = vmatpush2.msra.mxu0 0.0
        %1047 = vmatprep.subr.mxu0 0.0
        %1048 = vmatpush2.msra.mxu0 0.0
        %1049 = vmatprep.subr.mxu0 0.0
        %1050 = vmatpush2.msra.mxu0 0.0
        %1051 = vmatprep.subr.mxu0 0.0
        %1052 = vmatpush2.msra.mxu0 0.0
        %1053 = vmatprep.subr.mxu0 0.0
        %1054 = vmatpush2.msra.mxu0 0.0
        %1055 = vmatprep.subr.mxu0 0.0
        %1056 = vmatpush2.msra.mxu0 0.0
        %1057 = vmatprep.subr.mxu0 0.0
        %1058 = vmatpush2.msra.mxu0 0.0
        %1059 = vmatprep.subr.mxu0 0.0
        %1060 = vmatpush2.msra.mxu0 0.0
        %1061 = vmatprep.subr.mxu0 0.0
        %1062 = vmatpush2.msra.mxu0 0.0
        %1063 = vmatprep.subr.mxu0 0.0
        %1064 = vmatpush2.msra.mxu0 0.0
        %1065 = vmatprep.subr.mxu0 0.0
        %1066 = vmatpush2.msra.mxu0 0.0
        %1067 = vmatprep.subr.mxu0 0.0
        %1068 = vmatpush2.msra.mxu0 0.0
        %1069 = vmatprep.subr.mxu0 0.0
        %1070 = vmatpush2.msra.mxu0 0.0
        %1071 = vmatprep.subr.mxu0 0.0
        %1072 = vmatpush2.msra.mxu0 0.0
        %1073 = vmatprep.subr.mxu0 0.0
        %1074 = vmatpush2.msra.mxu0 0.0
        %1075 = vmatprep.mubr.f32.mxu0 0.0
        %1076 = vmatmul.mubr.f32.gmra.mxu0 %v1006
        %v1077 = vpop.f32.mrf.mxu0
        %v1078 = vadd.f32 0.0, %v1077
        %v1079 = vpop.f32.mrf.mxu0
        %1080 = vmatprep.mubr.f32.mxu0 0.0
        %1081 = vmatmul.mubr.f32.gmra.mxu0 %v1009
        %v1082 = vpop.f32.mrf.mxu0
        %v1083 = vadd.f32 0.0, %v1082
        %v1084 = vpop.f32.mrf.mxu0
        %1085 = vdwg.mxu0
        %1086 = vmatprep.subr.mxu0 0.0
        %1087 = vmatpush1.msra.mxu0 0.0
        %1088 = vmatprep.subr.mxu0 0.0
        %1089 = vmatpush1.msra.mxu0 0.0
        %1090 = vmatprep.subr.mxu0 0.0
        %1091 = vmatpush1.msra.mxu0 0.0
        %1092 = vmatprep.subr.mxu0 0.0
        %1093 = vmatpush1.msra.mxu0 0.0
        %1094 = vmatprep.subr.mxu0 0.0
        %1095 = vmatpush1.msra.mxu0 0.0
        %1096 = vmatprep.subr.mxu0 0.0
        %1097 = vmatpush1.msra.mxu0 0.0
        %1098 = vmatprep.subr.mxu0 0.0
        %1099 = vmatpush1.msra.mxu0 0.0
        %1100 = vmatprep.subr.mxu0 0.0
        %1101 = vmatpush1.msra.mxu0 0.0
        %1102 = vmatprep.subr.mxu0 0.0
        %1103 = vmatpush1.msra.mxu0 0.0
        %1104 = vmatprep.subr.mxu0 0.0
        %1105 = vmatpush1.msra.mxu0 0.0
        %1106 = vmatprep.subr.mxu0 0.0
        %1107 = vmatpush1.msra.mxu0 0.0
        %1108 = vmatprep.subr.mxu0 0.0
        %1109 = vmatpush1.msra.mxu0 0.0
        %1110 = vmatprep.subr.mxu0 0.0
        %1111 = vmatpush1.msra.mxu0 0.0
        %1112 = vmatprep.subr.mxu0 0.0
        %1113 = vmatpush1.msra.mxu0 0.0
        %1114 = vmatprep.subr.mxu0 0.0
        %1115 = vmatpush1.msra.mxu0 %v1083
        %1116 = vmatprep.subr.mxu0 0.0
        %1117 = vmatpush1.msra.mxu0 %v1078
        %1118 = vmatprep.subr.mxu0 0.0
        %1119 = vmatpush2.msra.mxu0 0.0
        %1120 = vmatprep.subr.mxu0 0.0
        %1121 = vmatpush2.msra.mxu0 0.0
        %1122 = vmatprep.subr.mxu0 0.0
        %1123 = vmatpush2.msra.mxu0 0.0
        %1124 = vmatprep.subr.mxu0 0.0
        %1125 = vmatpush2.msra.mxu0 0.0
        %1126 = vmatprep.subr.mxu0 0.0
        %1127 = vmatpush2.msra.mxu0 0.0
        %1128 = vmatprep.subr.mxu0 0.0
        %1129 = vmatpush2.msra.mxu0 0.0
        %1130 = vmatprep.subr.mxu0 0.0
        %1131 = vmatpush2.msra.mxu0 0.0
        %1132 = vmatprep.subr.mxu0 0.0
        %1133 = vmatpush2.msra.mxu0 0.0
        %1134 = vmatprep.subr.mxu0 0.0
        %1135 = vmatpush2.msra.mxu0 0.0
        %1136 = vmatprep.subr.mxu0 0.0
        %1137 = vmatpush2.msra.mxu0 0.0
        %1138 = vmatprep.subr.mxu0 0.0
        %1139 = vmatpush2.msra.mxu0 0.0
        %1140 = vmatprep.subr.mxu0 0.0
        %1141 = vmatpush2.msra.mxu0 0.0
        %1142 = vmatprep.subr.mxu0 0.0
        %1143 = vmatpush2.msra.mxu0 0.0
        %1144 = vmatprep.subr.mxu0 0.0
        %1145 = vmatpush2.msra.mxu0 0.0
        %1146 = vmatprep.subr.mxu0 0.0
        %1147 = vmatpush2.msra.mxu0 0.0
        %1148 = vmatprep.subr.mxu0 0.0
        %1149 = vmatpush2.msra.mxu0 0.0
        %1150 = vmatprep.mubr.f32.mxu0 0.0
        %1151 = vmatmul.mubr.f32.gmra.mxu0 %v609
        %v1152 = vpop.f32.mrf.mxu0
        %v1153 = vadd.f32 0.0, %v1152
        %v1154 = vpop.f32.mrf.mxu0
        %1155 = vmatprep.mubr.f32.mxu0 0.0
        %1156 = vmatmul.mubr.f32.gmra.mxu0 %v612
        %v1157 = vpop.f32.mrf.mxu0
        %v1158 = vadd.f32 0.0, %v1157
        %v1159 = vpop.f32.mrf.mxu0
        %1160 = vdwg.mxu0
        %v1161 = vmul.f32 %v458, %v460
        %v1162 = vmul.f32 %v459, %v461
        %v1164 = vsel %vm472, %v1161, 0
        %v1167 = vsel %vm472, %v1162, 0
        %1169 = vmatprep.subr.mxu0 0.0
        %1170 = vmatpush1.msra.mxu0 0.0
        %1171 = vmatprep.subr.mxu0 0.0
        %1172 = vmatpush1.msra.mxu0 0.0
        %1173 = vmatprep.subr.mxu0 0.0
        %1174 = vmatpush1.msra.mxu0 0.0
        %1175 = vmatprep.subr.mxu0 0.0
        %1176 = vmatpush1.msra.mxu0 0.0
        %1177 = vmatprep.subr.mxu0 0.0
        %1178 = vmatpush1.msra.mxu0 0.0
        %1179 = vmatprep.subr.mxu0 0.0
        %1180 = vmatpush1.msra.mxu0 0.0
        %1181 = vmatprep.subr.mxu0 0.0
        %1182 = vmatpush1.msra.mxu0 0.0
        %1183 = vmatprep.subr.mxu0 0.0
        %1184 = vmatpush1.msra.mxu0 0.0
        %1185 = vmatprep.subr.mxu0 0.0
        %1186 = vmatpush1.msra.mxu0 0.0
        %1187 = vmatprep.subr.mxu0 0.0
        %1188 = vmatpush1.msra.mxu0 0.0
        %1189 = vmatprep.subr.mxu0 0.0
        %1190 = vmatpush1.msra.mxu0 0.0
        %1191 = vmatprep.subr.mxu0 0.0
        %1192 = vmatpush1.msra.mxu0 0.0
        %1193 = vmatprep.subr.mxu0 0.0
        %1194 = vmatpush1.msra.mxu0 0.0
        %1195 = vmatprep.subr.mxu0 0.0
        %1196 = vmatpush1.msra.mxu0 0.0
        %1197 = vmatprep.subr.mxu0 0.0
        %1198 = vmatpush1.msra.mxu0 %v451
        %1199 = vmatprep.subr.mxu0 0.0
        %1200 = vmatpush1.msra.mxu0 %v450
        %1201 = vmatprep.subr.mxu0 0.0
        %1202 = vmatpush2.msra.mxu0 0.0
        %1203 = vmatprep.subr.mxu0 0.0
        %1204 = vmatpush2.msra.mxu0 0.0
        %1205 = vmatprep.subr.mxu0 0.0
        %1206 = vmatpush2.msra.mxu0 0.0
        %1207 = vmatprep.subr.mxu0 0.0
        %1208 = vmatpush2.msra.mxu0 0.0
        %1209 = vmatprep.subr.mxu0 0.0
        %1210 = vmatpush2.msra.mxu0 0.0
        %1211 = vmatprep.subr.mxu0 0.0
        %1212 = vmatpush2.msra.mxu0 0.0
        %1213 = vmatprep.subr.mxu0 0.0
        %1214 = vmatpush2.msra.mxu0 0.0
        %1215 = vmatprep.subr.mxu0 0.0
        %1216 = vmatpush2.msra.mxu0 0.0
        %1217 = vmatprep.subr.mxu0 0.0
        %1218 = vmatpush2.msra.mxu0 0.0
        %1219 = vmatprep.subr.mxu0 0.0
        %1220 = vmatpush2.msra.mxu0 0.0
        %1221 = vmatprep.subr.mxu0 0.0
        %1222 = vmatpush2.msra.mxu0 0.0
        %1223 = vmatprep.subr.mxu0 0.0
        %1224 = vmatpush2.msra.mxu0 0.0
        %1225 = vmatprep.subr.mxu0 0.0
        %1226 = vmatpush2.msra.mxu0 0.0
        %1227 = vmatprep.subr.mxu0 0.0
        %1228 = vmatpush2.msra.mxu0 0.0
        %1229 = vmatprep.subr.mxu0 0.0
        %1230 = vmatpush2.msra.mxu0 0.0
        %1231 = vmatprep.subr.mxu0 0.0
        %1232 = vmatpush2.msra.mxu0 0.0
        %1233 = vmatprep.mubr.f32.mxu0 0.0
        %1234 = vmatmul.mubr.f32.gmra.mxu0 %v1164
        %v1235 = vpop.f32.mrf.mxu0
        %v1236 = vadd.f32 0.0, %v1235
        %v1237 = vpop.f32.mrf.mxu0
        %1238 = vmatprep.mubr.f32.mxu0 0.0
        %1239 = vmatmul.mubr.f32.gmra.mxu0 %v1167
        %v1240 = vpop.f32.mrf.mxu0
        %v1241 = vadd.f32 0.0, %v1240
        %v1242 = vpop.f32.mrf.mxu0
        %1243 = vdwg.mxu0
        %1244 = vmatprep.subr.mxu0 0.0
        %1245 = vmatpush1.msra.mxu0 0.0
        %1246 = vmatprep.subr.mxu0 0.0
        %1247 = vmatpush1.msra.mxu0 0.0
        %1248 = vmatprep.subr.mxu0 0.0
        %1249 = vmatpush1.msra.mxu0 0.0
        %1250 = vmatprep.subr.mxu0 0.0
        %1251 = vmatpush1.msra.mxu0 0.0
        %1252 = vmatprep.subr.mxu0 0.0
        %1253 = vmatpush1.msra.mxu0 0.0
        %1254 = vmatprep.subr.mxu0 0.0
        %1255 = vmatpush1.msra.mxu0 0.0
        %1256 = vmatprep.subr.mxu0 0.0
        %1257 = vmatpush1.msra.mxu0 0.0
        %1258 = vmatprep.subr.mxu0 0.0
        %1259 = vmatpush1.msra.mxu0 0.0
        %1260 = vmatprep.subr.mxu0 0.0
        %1261 = vmatpush1.msra.mxu0 0.0
        %1262 = vmatprep.subr.mxu0 0.0
        %1263 = vmatpush1.msra.mxu0 0.0
        %1264 = vmatprep.subr.mxu0 0.0
        %1265 = vmatpush1.msra.mxu0 0.0
        %1266 = vmatprep.subr.mxu0 0.0
        %1267 = vmatpush1.msra.mxu0 0.0
        %1268 = vmatprep.subr.mxu0 0.0
        %1269 = vmatpush1.msra.mxu0 0.0
        %1270 = vmatprep.subr.mxu0 0.0
        %1271 = vmatpush1.msra.mxu0 0.0
        %1272 = vmatprep.subr.mxu0 0.0
        %1273 = vmatpush1.msra.mxu0 %v1241
        %1274 = vmatprep.subr.mxu0 0.0
        %1275 = vmatpush1.msra.mxu0 %v1236
        %1276 = vmatprep.subr.mxu0 0.0
        %1277 = vmatpush2.msra.mxu0 0.0
        %1278 = vmatprep.subr.mxu0 0.0
        %1279 = vmatpush2.msra.mxu0 0.0
        %1280 = vmatprep.subr.mxu0 0.0
        %1281 = vmatpush2.msra.mxu0 0.0
        %1282 = vmatprep.subr.mxu0 0.0
        %1283 = vmatpush2.msra.mxu0 0.0
        %1284 = vmatprep.subr.mxu0 0.0
        %1285 = vmatpush2.msra.mxu0 0.0
        %1286 = vmatprep.subr.mxu0 0.0
        %1287 = vmatpush2.msra.mxu0 0.0
        %1288 = vmatprep.subr.mxu0 0.0
        %1289 = vmatpush2.msra.mxu0 0.0
        %1290 = vmatprep.subr.mxu0 0.0
        %1291 = vmatpush2.msra.mxu0 0.0
        %1292 = vmatprep.subr.mxu0 0.0
        %1293 = vmatpush2.msra.mxu0 0.0
        %1294 = vmatprep.subr.mxu0 0.0
        %1295 = vmatpush2.msra.mxu0 0.0
        %1296 = vmatprep.subr.mxu0 0.0
        %1297 = vmatpush2.msra.mxu0 0.0
        %1298 = vmatprep.subr.mxu0 0.0
        %1299 = vmatpush2.msra.mxu0 0.0
        %1300 = vmatprep.subr.mxu0 0.0
        %1301 = vmatpush2.msra.mxu0 0.0
        %1302 = vmatprep.subr.mxu0 0.0
        %1303 = vmatpush2.msra.mxu0 0.0
        %1304 = vmatprep.subr.mxu0 0.0
        %1305 = vmatpush2.msra.mxu0 0.0
        %1306 = vmatprep.subr.mxu0 0.0
        %1307 = vmatpush2.msra.mxu0 0.0
        %1308 = vmatprep.mubr.f32.mxu0 0.0
        %1309 = vmatmul.mubr.f32.gmra.mxu0 %v609
        %v1310 = vpop.f32.mrf.mxu0
        %v1311 = vadd.f32 0.0, %v1310
        %v1312 = vpop.f32.mrf.mxu0
        %1313 = vmatprep.mubr.f32.mxu0 0.0
        %1314 = vmatmul.mubr.f32.gmra.mxu0 %v612
        %v1315 = vpop.f32.mrf.mxu0
        %v1316 = vadd.f32 0.0, %v1315
        %v1317 = vpop.f32.mrf.mxu0
        %1318 = vdwg.mxu0
        %v1319 = vmul.f32 %v681, %v681
        %v1320 = vmul.f32 %v686, %v686
        %v1321 = vmul.f32 %v837, %v837
        %v1322 = vmul.f32 %v842, %v842
        %v1323 = vmul.f32 %v681, %v837
        %v1324 = vmul.f32 %v686, %v842
        %v1325 = vsub.f32 %v995, %v1319
        %v1326 = vsub.f32 %v1000, %v1320
        %v1327 = vsub.f32 %v1153, %v1321
        %v1328 = vsub.f32 %v1158, %v1322
        %v1329 = vsub.f32 %v1311, %v1323
        %v1330 = vsub.f32 %v1316, %v1324
        %v1331 = vmul.f32 %v1323, 2.0
        %v1332 = vmul.f32 %v1324, 2.0
        %v1333 = vadd.f32 %v1331, 0.0001
        %v1334 = vadd.f32 %v1332, 0.0001
        %v1335 = vmul.f32 %v1329, 2.0
        %v1336 = vmul.f32 %v1330, 2.0
        %v1337 = vadd.f32 %v1335, 0.0009
        %v1338 = vadd.f32 %v1336, 0.0009
        %v1339 = vmul.f32 %v1333, %v1337
        %v1340 = vmul.f32 %v1334, %v1338
        %v1341 = vadd.f32 %v1319, %v1321
        %v1342 = vadd.f32 %v1320, %v1322
        %v1343 = vadd.f32 %v1341, 0.0001
        %v1344 = vadd.f32 %v1342, 0.0001
        %v1345 = vadd.f32 %v1325, %v1327
        %v1346 = vadd.f32 %v1326, %v1328
        %v1347 = vadd.f32 %v1345, 0.0009
        %v1348 = vadd.f32 %v1346, 0.0009
        %v1349 = vmul.f32 %v1343, %v1347
        %v1350 = vmul.f32 %v1344, %v1348
        %v1351 = vrcp.pop %v1349
        %v1352 = vmul.f32 %v1339, %v1351
        %v1353 = vrcp.pop %v1350
        %v1354 = vmul.f32 %v1340, %v1353
        %v1355 = vsel %vm472, %v1352, 0.0
        %v1356 = vsel %vm472, %v1354, 0.0
        %v1357 = vadd.f32 %v1355, %v1356
        %1358 = vadd.xlane.f32.xlu0 %v1357
        %v1359 = vpop.xlane.xlu0 %1358
        %v1360 = vrot.slane %v1359, 4
        %v1361 = vadd.f32 %v1359, %v1360
        %v1362 = vrot.slane %v1361, 2
        %v1363 = vadd.f32 %v1361, %v1362
        %v1364 = vrot.slane %v1363, 1
        %v1365 = vadd.f32 %v1363, %v1364
        %s1366 = vtos %v1365
        %v1368 = vsel %vm472, %v462, 0
        %v1371 = vsel %vm472, %v463, 0
        %1373 = vmatprep.subr.mxu0 0.0
        %1374 = vmatpush1.msra.mxu0 0.0
        %1375 = vmatprep.subr.mxu0 0.0
        %1376 = vmatpush1.msra.mxu0 0.0
        %1377 = vmatprep.subr.mxu0 0.0
        %1378 = vmatpush1.msra.mxu0 0.0
        %1379 = vmatprep.subr.mxu0 0.0
        %1380 = vmatpush1.msra.mxu0 0.0
        %1381 = vmatprep.subr.mxu0 0.0
        %1382 = vmatpush1.msra.mxu0 0.0
        %1383 = vmatprep.subr.mxu0 0.0
        %1384 = vmatpush1.msra.mxu0 0.0
        %1385 = vmatprep.subr.mxu0 0.0
        %1386 = vmatpush1.msra.mxu0 0.0
        %1387 = vmatprep.subr.mxu0 0.0
        %1388 = vmatpush1.msra.mxu0 0.0
        %1389 = vmatprep.subr.mxu0 0.0
        %1390 = vmatpush1.msra.mxu0 0.0
        %1391 = vmatprep.subr.mxu0 0.0
        %1392 = vmatpush1.msra.mxu0 0.0
        %1393 = vmatprep.subr.mxu0 0.0
        %1394 = vmatpush1.msra.mxu0 0.0
        %1395 = vmatprep.subr.mxu0 0.0
        %1396 = vmatpush1.msra.mxu0 0.0
        %1397 = vmatprep.subr.mxu0 0.0
        %1398 = vmatpush1.msra.mxu0 0.0
        %1399 = vmatprep.subr.mxu0 0.0
        %1400 = vmatpush1.msra.mxu0 0.0
        %1401 = vmatprep.subr.mxu0 0.0
        %1402 = vmatpush1.msra.mxu0 %v451
        %1403 = vmatprep.subr.mxu0 0.0
        %1404 = vmatpush1.msra.mxu0 %v450
        %1405 = vmatprep.subr.mxu0 0.0
        %1406 = vmatpush2.msra.mxu0 0.0
        %1407 = vmatprep.subr.mxu0 0.0
        %1408 = vmatpush2.msra.mxu0 0.0
        %1409 = vmatprep.subr.mxu0 0.0
        %1410 = vmatpush2.msra.mxu0 0.0
        %1411 = vmatprep.subr.mxu0 0.0
        %1412 = vmatpush2.msra.mxu0 0.0
        %1413 = vmatprep.subr.mxu0 0.0
        %1414 = vmatpush2.msra.mxu0 0.0
        %1415 = vmatprep.subr.mxu0 0.0
        %1416 = vmatpush2.msra.mxu0 0.0
        %1417 = vmatprep.subr.mxu0 0.0
        %1418 = vmatpush2.msra.mxu0 0.0
        %1419 = vmatprep.subr.mxu0 0.0
        %1420 = vmatpush2.msra.mxu0 0.0
        %1421 = vmatprep.subr.mxu0 0.0
        %1422 = vmatpush2.msra.mxu0 0.0
        %1423 = vmatprep.subr.mxu0 0.0
        %1424 = vmatpush2.msra.mxu0 0.0
        %1425 = vmatprep.subr.mxu0 0.0
        %1426 = vmatpush2.msra.mxu0 0.0
        %1427 = vmatprep.subr.mxu0 0.0
        %1428 = vmatpush2.msra.mxu0 0.0
        %1429 = vmatprep.subr.mxu0 0.0
        %1430 = vmatpush2.msra.mxu0 0.0
        %1431 = vmatprep.subr.mxu0 0.0
        %1432 = vmatpush2.msra.mxu0 0.0
        %1433 = vmatprep.subr.mxu0 0.0
        %1434 = vmatpush2.msra.mxu0 0.0
        %1435 = vmatprep.subr.mxu0 0.0
        %1436 = vmatpush2.msra.mxu0 0.0
        %1437 = vmatprep.mubr.f32.mxu0 0.0
        %1438 = vmatmul.mubr.f32.gmra.mxu0 %v1368
        %v1439 = vpop.f32.mrf.mxu0
        %v1440 = vadd.f32 0.0, %v1439
        %v1441 = vpop.f32.mrf.mxu0
        %1442 = vmatprep.mubr.f32.mxu0 0.0
        %1443 = vmatmul.mubr.f32.gmra.mxu0 %v1371
        %v1444 = vpop.f32.mrf.mxu0
        %v1445 = vadd.f32 0.0, %v1444
        %v1446 = vpop.f32.mrf.mxu0
        %1447 = vdwg.mxu0
        %1448 = vmatprep.subr.mxu0 0.0
        %1449 = vmatpush1.msra.mxu0 0.0
        %1450 = vmatprep.subr.mxu0 0.0
        %1451 = vmatpush1.msra.mxu0 0.0
        %1452 = vmatprep.subr.mxu0 0.0
        %1453 = vmatpush1.msra.mxu0 0.0
        %1454 = vmatprep.subr.mxu0 0.0
        %1455 = vmatpush1.msra.mxu0 0.0
        %1456 = vmatprep.subr.mxu0 0.0
        %1457 = vmatpush1.msra.mxu0 0.0
        %1458 = vmatprep.subr.mxu0 0.0
        %1459 = vmatpush1.msra.mxu0 0.0
        %1460 = vmatprep.subr.mxu0 0.0
        %1461 = vmatpush1.msra.mxu0 0.0
        %1462 = vmatprep.subr.mxu0 0.0
        %1463 = vmatpush1.msra.mxu0 0.0
        %1464 = vmatprep.subr.mxu0 0.0
        %1465 = vmatpush1.msra.mxu0 0.0
        %1466 = vmatprep.subr.mxu0 0.0
        %1467 = vmatpush1.msra.mxu0 0.0
        %1468 = vmatprep.subr.mxu0 0.0
        %1469 = vmatpush1.msra.mxu0 0.0
        %1470 = vmatprep.subr.mxu0 0.0
        %1471 = vmatpush1.msra.mxu0 0.0
        %1472 = vmatprep.subr.mxu0 0.0
        %1473 = vmatpush1.msra.mxu0 0.0
        %1474 = vmatprep.subr.mxu0 0.0
        %1475 = vmatpush1.msra.mxu0 0.0
        %1476 = vmatprep.subr.mxu0 0.0
        %1477 = vmatpush1.msra.mxu0 %v1445
        %1478 = vmatprep.subr.mxu0 0.0
        %1479 = vmatpush1.msra.mxu0 %v1440
        %1480 = vmatprep.subr.mxu0 0.0
        %1481 = vmatpush2.msra.mxu0 0.0
        %1482 = vmatprep.subr.mxu0 0.0
        %1483 = vmatpush2.msra.mxu0 0.0
        %1484 = vmatprep.subr.mxu0 0.0
        %1485 = vmatpush2.msra.mxu0 0.0
        %1486 = vmatprep.subr.mxu0 0.0
        %1487 = vmatpush2.msra.mxu0 0.0
        %1488 = vmatprep.subr.mxu0 0.0
        %1489 = vmatpush2.msra.mxu0 0.0
        %1490 = vmatprep.subr.mxu0 0.0
        %1491 = vmatpush2.msra.mxu0 0.0
        %1492 = vmatprep.subr.mxu0 0.0
        %1493 = vmatpush2.msra.mxu0 0.0
        %1494 = vmatprep.subr.mxu0 0.0
        %1495 = vmatpush2.msra.mxu0 0.0
        %1496 = vmatprep.subr.mxu0 0.0
        %1497 = vmatpush2.msra.mxu0 0.0
        %1498 = vmatprep.subr.mxu0 0.0
        %1499 = vmatpush2.msra.mxu0 0.0
        %1500 = vmatprep.subr.mxu0 0.0
        %1501 = vmatpush2.msra.mxu0 0.0
        %1502 = vmatprep.subr.mxu0 0.0
        %1503 = vmatpush2.msra.mxu0 0.0
        %1504 = vmatprep.subr.mxu0 0.0
        %1505 = vmatpush2.msra.mxu0 0.0
        %1506 = vmatprep.subr.mxu0 0.0
        %1507 = vmatpush2.msra.mxu0 0.0
        %1508 = vmatprep.subr.mxu0 0.0
        %1509 = vmatpush2.msra.mxu0 0.0
        %1510 = vmatprep.subr.mxu0 0.0
        %1511 = vmatpush2.msra.mxu0 0.0
        %1512 = vmatprep.mubr.f32.mxu0 0.0
        %1513 = vmatmul.mubr.f32.gmra.mxu0 %v609
        %v1514 = vpop.f32.mrf.mxu0
        %v1515 = vadd.f32 0.0, %v1514
        %v1516 = vpop.f32.mrf.mxu0
        %1517 = vmatprep.mubr.f32.mxu0 0.0
        %1518 = vmatmul.mubr.f32.gmra.mxu0 %v612
        %v1519 = vpop.f32.mrf.mxu0
        %v1520 = vadd.f32 0.0, %v1519
        %v1521 = vpop.f32.mrf.mxu0
        %1522 = vdwg.mxu0
        %v1524 = vsel %vm472, %v464, 0
        %v1527 = vsel %vm472, %v465, 0
        %1529 = vmatprep.subr.mxu0 0.0
        %1530 = vmatpush1.msra.mxu0 0.0
        %1531 = vmatprep.subr.mxu0 0.0
        %1532 = vmatpush1.msra.mxu0 0.0
        %1533 = vmatprep.subr.mxu0 0.0
        %1534 = vmatpush1.msra.mxu0 0.0
        %1535 = vmatprep.subr.mxu0 0.0
        %1536 = vmatpush1.msra.mxu0 0.0
        %1537 = vmatprep.subr.mxu0 0.0
        %1538 = vmatpush1.msra.mxu0 0.0
        %1539 = vmatprep.subr.mxu0 0.0
        %1540 = vmatpush1.msra.mxu0 0.0
        %1541 = vmatprep.subr.mxu0 0.0
        %1542 = vmatpush1.msra.mxu0 0.0
        %1543 = vmatprep.subr.mxu0 0.0
        %1544 = vmatpush1.msra.mxu0 0.0
        %1545 = vmatprep.subr.mxu0 0.0
        %1546 = vmatpush1.msra.mxu0 0.0
        %1547 = vmatprep.subr.mxu0 0.0
        %1548 = vmatpush1.msra.mxu0 0.0
        %1549 = vmatprep.subr.mxu0 0.0
        %1550 = vmatpush1.msra.mxu0 0.0
        %1551 = vmatprep.subr.mxu0 0.0
        %1552 = vmatpush1.msra.mxu0 0.0
        %1553 = vmatprep.subr.mxu0 0.0
        %1554 = vmatpush1.msra.mxu0 0.0
        %1555 = vmatprep.subr.mxu0 0.0
        %1556 = vmatpush1.msra.mxu0 0.0
        %1557 = vmatprep.subr.mxu0 0.0
        %1558 = vmatpush1.msra.mxu0 %v451
        %1559 = vmatprep.subr.mxu0 0.0
        %1560 = vmatpush1.msra.mxu0 %v450
        %1561 = vmatprep.subr.mxu0 0.0
        %1562 = vmatpush2.msra.mxu0 0.0
        %1563 = vmatprep.subr.mxu0 0.0
        %1564 = vmatpush2.msra.mxu0 0.0
        %1565 = vmatprep.subr.mxu0 0.0
        %1566 = vmatpush2.msra.mxu0 0.0
        %1567 = vmatprep.subr.mxu0 0.0
        %1568 = vmatpush2.msra.mxu0 0.0
        %1569 = vmatprep.subr.mxu0 0.0
        %1570 = vmatpush2.msra.mxu0 0.0
        %1571 = vmatprep.subr.mxu0 0.0
        %1572 = vmatpush2.msra.mxu0 0.0
        %1573 = vmatprep.subr.mxu0 0.0
        %1574 = vmatpush2.msra.mxu0 0.0
        %1575 = vmatprep.subr.mxu0 0.0
        %1576 = vmatpush2.msra.mxu0 0.0
        %1577 = vmatprep.subr.mxu0 0.0
        %1578 = vmatpush2.msra.mxu0 0.0
        %1579 = vmatprep.subr.mxu0 0.0
        %1580 = vmatpush2.msra.mxu0 0.0
        %1581 = vmatprep.subr.mxu0 0.0
        %1582 = vmatpush2.msra.mxu0 0.0
        %1583 = vmatprep.subr.mxu0 0.0
        %1584 = vmatpush2.msra.mxu0 0.0
        %1585 = vmatprep.subr.mxu0 0.0
        %1586 = vmatpush2.msra.mxu0 0.0
        %1587 = vmatprep.subr.mxu0 0.0
        %1588 = vmatpush2.msra.mxu0 0.0
        %1589 = vmatprep.subr.mxu0 0.0
        %1590 = vmatpush2.msra.mxu0 0.0
        %1591 = vmatprep.subr.mxu0 0.0
        %1592 = vmatpush2.msra.mxu0 0.0
        %1593 = vmatprep.mubr.f32.mxu0 0.0
        %1594 = vmatmul.mubr.f32.gmra.mxu0 %v1524
        %v1595 = vpop.f32.mrf.mxu0
        %v1596 = vadd.f32 0.0, %v1595
        %v1597 = vpop.f32.mrf.mxu0
        %1598 = vmatprep.mubr.f32.mxu0 0.0
        %1599 = vmatmul.mubr.f32.gmra.mxu0 %v1527
        %v1600 = vpop.f32.mrf.mxu0
        %v1601 = vadd.f32 0.0, %v1600
        %v1602 = vpop.f32.mrf.mxu0
        %1603 = vdwg.mxu0
        %1604 = vmatprep.subr.mxu0 0.0
        %1605 = vmatpush1.msra.mxu0 0.0
        %1606 = vmatprep.subr.mxu0 0.0
        %1607 = vmatpush1.msra.mxu0 0.0
        %1608 = vmatprep.subr.mxu0 0.0
        %1609 = vmatpush1.msra.mxu0 0.0
        %1610 = vmatprep.subr.mxu0 0.0
        %1611 = vmatpush1.msra.mxu0 0.0
        %1612 = vmatprep.subr.mxu0 0.0
        %1613 = vmatpush1.msra.mxu0 0.0
        %1614 = vmatprep.subr.mxu0 0.0
        %1615 = vmatpush1.msra.mxu0 0.0
        %1616 = vmatprep.subr.mxu0 0.0
        %1617 = vmatpush1.msra.mxu0 0.0
        %1618 = vmatprep.subr.mxu0 0.0
        %1619 = vmatpush1.msra.mxu0 0.0
        %1620 = vmatprep.subr.mxu0 0.0
        %1621 = vmatpush1.msra.mxu0 0.0
        %1622 = vmatprep.subr.mxu0 0.0
        %1623 = vmatpush1.msra.mxu0 0.0
        %1624 = vmatprep.subr.mxu0 0.0
        %1625 = vmatpush1.msra.mxu0 0.0
        %1626 = vmatprep.subr.mxu0 0.0
        %1627 = vmatpush1.msra.mxu0 0.0
        %1628 = vmatprep.subr.mxu0 0.0
        %1629 = vmatpush1.msra.mxu0 0.0
        %1630 = vmatprep.subr.mxu0 0.0
        %1631 = vmatpush1.msra.mxu0 0.0
        %1632 = vmatprep.subr.mxu0 0.0
        %1633 = vmatpush1.msra.mxu0 %v1601
        %1634 = vmatprep.subr.mxu0 0.0
        %1635 = vmatpush1.msra.mxu0 %v1596
        %1636 = vmatprep.subr.mxu0 0.0
        %1637 = vmatpush2.msra.mxu0 0.0
        %1638 = vmatprep.subr.mxu0 0.0
        %1639 = vmatpush2.msra.mxu0 0.0
        %1640 = vmatprep.subr.mxu0 0.0
        %1641 = vmatpush2.msra.mxu0 0.0
        %1642 = vmatprep.subr.mxu0 0.0
        %1643 = vmatpush2.msra.mxu0 0.0
        %1644 = vmatprep.subr.mxu0 0.0
        %1645 = vmatpush2.msra.mxu0 0.0
        %1646 = vmatprep.subr.mxu0 0.0
        %1647 = vmatpush2.msra.mxu0 0.0
        %1648 = vmatprep.subr.mxu0 0.0
        %1649 = vmatpush2.msra.mxu0 0.0
        %1650 = vmatprep.subr.mxu0 0.0
        %1651 = vmatpush2.msra.mxu0 0.0
        %1652 = vmatprep.subr.mxu0 0.0
        %1653 = vmatpush2.msra.mxu0 0.0
        %1654 = vmatprep.subr.mxu0 0.0
        %1655 = vmatpush2.msra.mxu0 0.0
        %1656 = vmatprep.subr.mxu0 0.0
        %1657 = vmatpush2.msra.mxu0 0.0
        %1658 = vmatprep.subr.mxu0 0.0
        %1659 = vmatpush2.msra.mxu0 0.0
        %1660 = vmatprep.subr.mxu0 0.0
        %1661 = vmatpush2.msra.mxu0 0.0
        %1662 = vmatprep.subr.mxu0 0.0
        %1663 = vmatpush2.msra.mxu0 0.0
        %1664 = vmatprep.subr.mxu0 0.0
        %1665 = vmatpush2.msra.mxu0 0.0
        %1666 = vmatprep.subr.mxu0 0.0
        %1667 = vmatpush2.msra.mxu0 0.0
        %1668 = vmatprep.mubr.f32.mxu0 0.0
        %1669 = vmatmul.mubr.f32.gmra.mxu0 %v609
        %v1670 = vpop.f32.mrf.mxu0
        %v1671 = vadd.f32 0.0, %v1670
        %v1672 = vpop.f32.mrf.mxu0
        %1673 = vmatprep.mubr.f32.mxu0 0.0
        %1674 = vmatmul.mubr.f32.gmra.mxu0 %v612
        %v1675 = vpop.f32.mrf.mxu0
        %v1676 = vadd.f32 0.0, %v1675
        %v1677 = vpop.f32.mrf.mxu0
        %1678 = vdwg.mxu0
        %v1679 = vmul.f32 %v462, %v462
        %v1680 = vmul.f32 %v463, %v463
        %v1682 = vsel %vm472, %v1679, 0
        %v1685 = vsel %vm472, %v1680, 0
        %1687 = vmatprep.subr.mxu0 0.0
        %1688 = vmatpush1.msra.mxu0 0.0
        %1689 = vmatprep.subr.mxu0 0.0
        %1690 = vmatpush1.msra.mxu0 0.0
        %1691 = vmatprep.subr.mxu0 0.0
        %1692 = vmatpush1.msra.mxu0 0.0
        %1693 = vmatprep.subr.mxu0 0.0
        %1694 = vmatpush1.msra.mxu0 0.0
        %1695 = vmatprep.subr.mxu0 0.0
        %1696 = vmatpush1.msra.mxu0 0.0
        %1697 = vmatprep.subr.mxu0 0.0
        %1698 = vmatpush1.msra.mxu0 0.0
        %1699 = vmatprep.subr.mxu0 0.0
        %1700 = vmatpush1.msra.mxu0 0.0
        %1701 = vmatprep.subr.mxu0 0.0
        %1702 = vmatpush1.msra.mxu0 0.0
        %1703 = vmatprep.subr.mxu0 0.0
        %1704 = vmatpush1.msra.mxu0 0.0
        %1705 = vmatprep.subr.mxu0 0.0
        %1706 = vmatpush1.msra.mxu0 0.0
        %1707 = vmatprep.subr.mxu0 0.0
        %1708 = vmatpush1.msra.mxu0 0.0
        %1709 = vmatprep.subr.mxu0 0.0
        %1710 = vmatpush1.msra.mxu0 0.0
        %1711 = vmatprep.subr.mxu0 0.0
        %1712 = vmatpush1.msra.mxu0 0.0
        %1713 = vmatprep.subr.mxu0 0.0
        %1714 = vmatpush1.msra.mxu0 0.0
        %1715 = vmatprep.subr.mxu0 0.0
        %1716 = vmatpush1.msra.mxu0 %v451
        %1717 = vmatprep.subr.mxu0 0.0
        %1718 = vmatpush1.msra.mxu0 %v450
        %1719 = vmatprep.subr.mxu0 0.0
        %1720 = vmatpush2.msra.mxu0 0.0
        %1721 = vmatprep.subr.mxu0 0.0
        %1722 = vmatpush2.msra.mxu0 0.0
        %1723 = vmatprep.subr.mxu0 0.0
        %1724 = vmatpush2.msra.mxu0 0.0
        %1725 = vmatprep.subr.mxu0 0.0
        %1726 = vmatpush2.msra.mxu0 0.0
        %1727 = vmatprep.subr.mxu0 0.0
        %1728 = vmatpush2.msra.mxu0 0.0
        %1729 = vmatprep.subr.mxu0 0.0
        %1730 = vmatpush2.msra.mxu0 0.0
        %1731 = vmatprep.subr.mxu0 0.0
        %1732 = vmatpush2.msra.mxu0 0.0
        %1733 = vmatprep.subr.mxu0 0.0
        %1734 = vmatpush2.msra.mxu0 0.0
        %1735 = vmatprep.subr.mxu0 0.0
        %1736 = vmatpush2.msra.mxu0 0.0
        %1737 = vmatprep.subr.mxu0 0.0
        %1738 = vmatpush2.msra.mxu0 0.0
        %1739 = vmatprep.subr.mxu0 0.0
        %1740 = vmatpush2.msra.mxu0 0.0
        %1741 = vmatprep.subr.mxu0 0.0
        %1742 = vmatpush2.msra.mxu0 0.0
        %1743 = vmatprep.subr.mxu0 0.0
        %1744 = vmatpush2.msra.mxu0 0.0
        %1745 = vmatprep.subr.mxu0 0.0
        %1746 = vmatpush2.msra.mxu0 0.0
        %1747 = vmatprep.subr.mxu0 0.0
        %1748 = vmatpush2.msra.mxu0 0.0
        %1749 = vmatprep.subr.mxu0 0.0
        %1750 = vmatpush2.msra.mxu0 0.0
        %1751 = vmatprep.mubr.f32.mxu0 0.0
        %1752 = vmatmul.mubr.f32.gmra.mxu0 %v1682
        %v1753 = vpop.f32.mrf.mxu0
        %v1754 = vadd.f32 0.0, %v1753
        %v1755 = vpop.f32.mrf.mxu0
        %1756 = vmatprep.mubr.f32.mxu0 0.0
        %1757 = vmatmul.mubr.f32.gmra.mxu0 %v1685
        %v1758 = vpop.f32.mrf.mxu0
        %v1759 = vadd.f32 0.0, %v1758
        %v1760 = vpop.f32.mrf.mxu0
        %1761 = vdwg.mxu0
        %1762 = vmatprep.subr.mxu0 0.0
        %1763 = vmatpush1.msra.mxu0 0.0
        %1764 = vmatprep.subr.mxu0 0.0
        %1765 = vmatpush1.msra.mxu0 0.0
        %1766 = vmatprep.subr.mxu0 0.0
        %1767 = vmatpush1.msra.mxu0 0.0
        %1768 = vmatprep.subr.mxu0 0.0
        %1769 = vmatpush1.msra.mxu0 0.0
        %1770 = vmatprep.subr.mxu0 0.0
        %1771 = vmatpush1.msra.mxu0 0.0
        %1772 = vmatprep.subr.mxu0 0.0
        %1773 = vmatpush1.msra.mxu0 0.0
        %1774 = vmatprep.subr.mxu0 0.0
        %1775 = vmatpush1.msra.mxu0 0.0
        %1776 = vmatprep.subr.mxu0 0.0
        %1777 = vmatpush1.msra.mxu0 0.0
        %1778 = vmatprep.subr.mxu0 0.0
        %1779 = vmatpush1.msra.mxu0 0.0
        %1780 = vmatprep.subr.mxu0 0.0
        %1781 = vmatpush1.msra.mxu0 0.0
        %1782 = vmatprep.subr.mxu0 0.0
        %1783 = vmatpush1.msra.mxu0 0.0
        %1784 = vmatprep.subr.mxu0 0.0
        %1785 = vmatpush1.msra.mxu0 0.0
        %1786 = vmatprep.subr.mxu0 0.0
        %1787 = vmatpush1.msra.mxu0 0.0
        %1788 = vmatprep.subr.mxu0 0.0
        %1789 = vmatpush1.msra.mxu0 0.0
        %1790 = vmatprep.subr.mxu0 0.0
        %1791 = vmatpush1.msra.mxu0 %v1759
        %1792 = vmatprep.subr.mxu0 0.0
        %1793 = vmatpush1.msra.mxu0 %v1754
        %1794 = vmatprep.subr.mxu0 0.0
        %1795 = vmatpush2.msra.mxu0 0.0
        %1796 = vmatprep.subr.mxu0 0.0
        %1797 = vmatpush2.msra.mxu0 0.0
        %1798 = vmatprep.subr.mxu0 0.0
        %1799 = vmatpush2.msra.mxu0 0.0
        %1800 = vmatprep.subr.mxu0 0.0
        %1801 = vmatpush2.msra.mxu0 0.0
        %1802 = vmatprep.subr.mxu0 0.0
        %1803 = vmatpush2.msra.mxu0 0.0
        %1804 = vmatprep.subr.mxu0 0.0
        %1805 = vmatpush2.msra.mxu0 0.0
        %1806 = vmatprep.subr.mxu0 0.0
        %1807 = vmatpush2.msra.mxu0 0.0
        %1808 = vmatprep.subr.mxu0 0.0
        %1809 = vmatpush2.msra.mxu0 0.0
        %1810 = vmatprep.subr.mxu0 0.0
        %1811 = vmatpush2.msra.mxu0 0.0
        %1812 = vmatprep.subr.mxu0 0.0
        %1813 = vmatpush2.msra.mxu0 0.0
        %1814 = vmatprep.subr.mxu0 0.0
        %1815 = vmatpush2.msra.mxu0 0.0
        %1816 = vmatprep.subr.mxu0 0.0
        %1817 = vmatpush2.msra.mxu0 0.0
        %1818 = vmatprep.subr.mxu0 0.0
        %1819 = vmatpush2.msra.mxu0 0.0
        %1820 = vmatprep.subr.mxu0 0.0
        %1821 = vmatpush2.msra.mxu0 0.0
        %1822 = vmatprep.subr.mxu0 0.0
        %1823 = vmatpush2.msra.mxu0 0.0
        %1824 = vmatprep.subr.mxu0 0.0
        %1825 = vmatpush2.msra.mxu0 0.0
        %1826 = vmatprep.mubr.f32.mxu0 0.0
        %1827 = vmatmul.mubr.f32.gmra.mxu0 %v609
        %v1828 = vpop.f32.mrf.mxu0
        %v1829 = vadd.f32 0.0, %v1828
        %v1830 = vpop.f32.mrf.mxu0
        %1831 = vmatprep.mubr.f32.mxu0 0.0
        %1832 = vmatmul.mubr.f32.gmra.mxu0 %v612
        %v1833 = vpop.f32.mrf.mxu0
        %v1834 = vadd.f32 0.0, %v1833
        %v1835 = vpop.f32.mrf.mxu0
        %1836 = vdwg.mxu0
        %v1837 = vmul.f32 %v464, %v464
        %v1838 = vmul.f32 %v465, %v465
        %v1840 = vsel %vm472, %v1837, 0
        %v1843 = vsel %vm472, %v1838, 0
        %1845 = vmatprep.subr.mxu0 0.0
        %1846 = vmatpush1.msra.mxu0 0.0
        %1847 = vmatprep.subr.mxu0 0.0
        %1848 = vmatpush1.msra.mxu0 0.0
        %1849 = vmatprep.subr.mxu0 0.0
        %1850 = vmatpush1.msra.mxu0 0.0
        %1851 = vmatprep.subr.mxu0 0.0
        %1852 = vmatpush1.msra.mxu0 0.0
        %1853 = vmatprep.subr.mxu0 0.0
        %1854 = vmatpush1.msra.mxu0 0.0
        %1855 = vmatprep.subr.mxu0 0.0
        %1856 = vmatpush1.msra.mxu0 0.0
        %1857 = vmatprep.subr.mxu0 0.0
        %1858 = vmatpush1.msra.mxu0 0.0
        %1859 = vmatprep.subr.mxu0 0.0
        %1860 = vmatpush1.msra.mxu0 0.0
        %1861 = vmatprep.subr.mxu0 0.0
        %1862 = vmatpush1.msra.mxu0 0.0
        %1863 = vmatprep.subr.mxu0 0.0
        %1864 = vmatpush1.msra.mxu0 0.0
        %1865 = vmatprep.subr.mxu0 0.0
        %1866 = vmatpush1.msra.mxu0 0.0
        %1867 = vmatprep.subr.mxu0 0.0
        %1868 = vmatpush1.msra.mxu0 0.0
        %1869 = vmatprep.subr.mxu0 0.0
        %1870 = vmatpush1.msra.mxu0 0.0
        %1871 = vmatprep.subr.mxu0 0.0
        %1872 = vmatpush1.msra.mxu0 0.0
        %1873 = vmatprep.subr.mxu0 0.0
        %1874 = vmatpush1.msra.mxu0 %v451
        %1875 = vmatprep.subr.mxu0 0.0
        %1876 = vmatpush1.msra.mxu0 %v450
        %1877 = vmatprep.subr.mxu0 0.0
        %1878 = vmatpush2.msra.mxu0 0.0
        %1879 = vmatprep.subr.mxu0 0.0
        %1880 = vmatpush2.msra.mxu0 0.0
        %1881 = vmatprep.subr.mxu0 0.0
        %1882 = vmatpush2.msra.mxu0 0.0
        %1883 = vmatprep.subr.mxu0 0.0
        %1884 = vmatpush2.msra.mxu0 0.0
        %1885 = vmatprep.subr.mxu0 0.0
        %1886 = vmatpush2.msra.mxu0 0.0
        %1887 = vmatprep.subr.mxu0 0.0
        %1888 = vmatpush2.msra.mxu0 0.0
        %1889 = vmatprep.subr.mxu0 0.0
        %1890 = vmatpush2.msra.mxu0 0.0
        %1891 = vmatprep.subr.mxu0 0.0
        %1892 = vmatpush2.msra.mxu0 0.0
        %1893 = vmatprep.subr.mxu0 0.0
        %1894 = vmatpush2.msra.mxu0 0.0
        %1895 = vmatprep.subr.mxu0 0.0
        %1896 = vmatpush2.msra.mxu0 0.0
        %1897 = vmatprep.subr.mxu0 0.0
        %1898 = vmatpush2.msra.mxu0 0.0
        %1899 = vmatprep.subr.mxu0 0.0
        %1900 = vmatpush2.msra.mxu0 0.0
        %1901 = vmatprep.subr.mxu0 0.0
        %1902 = vmatpush2.msra.mxu0 0.0
        %1903 = vmatprep.subr.mxu0 0.0
        %1904 = vmatpush2.msra.mxu0 0.0
        %1905 = vmatprep.subr.mxu0 0.0
        %1906 = vmatpush2.msra.mxu0 0.0
        %1907 = vmatprep.subr.mxu0 0.0
        %1908 = vmatpush2.msra.mxu0 0.0
        %1909 = vmatprep.mubr.f32.mxu0 0.0
        %1910 = vmatmul.mubr.f32.gmra.mxu0 %v1840
        %v1911 = vpop.f32.mrf.mxu0
        %v1912 = vadd.f32 0.0, %v1911
        %v1913 = vpop.f32.mrf.mxu0
        %1914 = vmatprep.mubr.f32.mxu0 0.0
        %1915 = vmatmul.mubr.f32.gmra.mxu0 %v1843
        %v1916 = vpop.f32.mrf.mxu0
        %v1917 = vadd.f32 0.0, %v1916
        %v1918 = vpop.f32.mrf.mxu0
        %1919 = vdwg.mxu0
        %1920 = vmatprep.subr.mxu0 0.0
        %1921 = vmatpush1.msra.mxu0 0.0
        %1922 = vmatprep.subr.mxu0 0.0
        %1923 = vmatpush1.msra.mxu0 0.0
        %1924 = vmatprep.subr.mxu0 0.0
        %1925 = vmatpush1.msra.mxu0 0.0
        %1926 = vmatprep.subr.mxu0 0.0
        %1927 = vmatpush1.msra.mxu0 0.0
        %1928 = vmatprep.subr.mxu0 0.0
        %1929 = vmatpush1.msra.mxu0 0.0
        %1930 = vmatprep.subr.mxu0 0.0
        %1931 = vmatpush1.msra.mxu0 0.0
        %1932 = vmatprep.subr.mxu0 0.0
        %1933 = vmatpush1.msra.mxu0 0.0
        %1934 = vmatprep.subr.mxu0 0.0
        %1935 = vmatpush1.msra.mxu0 0.0
        %1936 = vmatprep.subr.mxu0 0.0
        %1937 = vmatpush1.msra.mxu0 0.0
        %1938 = vmatprep.subr.mxu0 0.0
        %1939 = vmatpush1.msra.mxu0 0.0
        %1940 = vmatprep.subr.mxu0 0.0
        %1941 = vmatpush1.msra.mxu0 0.0
        %1942 = vmatprep.subr.mxu0 0.0
        %1943 = vmatpush1.msra.mxu0 0.0
        %1944 = vmatprep.subr.mxu0 0.0
        %1945 = vmatpush1.msra.mxu0 0.0
        %1946 = vmatprep.subr.mxu0 0.0
        %1947 = vmatpush1.msra.mxu0 0.0
        %1948 = vmatprep.subr.mxu0 0.0
        %1949 = vmatpush1.msra.mxu0 %v1917
        %1950 = vmatprep.subr.mxu0 0.0
        %1951 = vmatpush1.msra.mxu0 %v1912
        %1952 = vmatprep.subr.mxu0 0.0
        %1953 = vmatpush2.msra.mxu0 0.0
        %1954 = vmatprep.subr.mxu0 0.0
        %1955 = vmatpush2.msra.mxu0 0.0
        %1956 = vmatprep.subr.mxu0 0.0
        %1957 = vmatpush2.msra.mxu0 0.0
        %1958 = vmatprep.subr.mxu0 0.0
        %1959 = vmatpush2.msra.mxu0 0.0
        %1960 = vmatprep.subr.mxu0 0.0
        %1961 = vmatpush2.msra.mxu0 0.0
        %1962 = vmatprep.subr.mxu0 0.0
        %1963 = vmatpush2.msra.mxu0 0.0
        %1964 = vmatprep.subr.mxu0 0.0
        %1965 = vmatpush2.msra.mxu0 0.0
        %1966 = vmatprep.subr.mxu0 0.0
        %1967 = vmatpush2.msra.mxu0 0.0
        %1968 = vmatprep.subr.mxu0 0.0
        %1969 = vmatpush2.msra.mxu0 0.0
        %1970 = vmatprep.subr.mxu0 0.0
        %1971 = vmatpush2.msra.mxu0 0.0
        %1972 = vmatprep.subr.mxu0 0.0
        %1973 = vmatpush2.msra.mxu0 0.0
        %1974 = vmatprep.subr.mxu0 0.0
        %1975 = vmatpush2.msra.mxu0 0.0
        %1976 = vmatprep.subr.mxu0 0.0
        %1977 = vmatpush2.msra.mxu0 0.0
        %1978 = vmatprep.subr.mxu0 0.0
        %1979 = vmatpush2.msra.mxu0 0.0
        %1980 = vmatprep.subr.mxu0 0.0
        %1981 = vmatpush2.msra.mxu0 0.0
        %1982 = vmatprep.subr.mxu0 0.0
        %1983 = vmatpush2.msra.mxu0 0.0
        %1984 = vmatprep.mubr.f32.mxu0 0.0
        %1985 = vmatmul.mubr.f32.gmra.mxu0 %v609
        %v1986 = vpop.f32.mrf.mxu0
        %v1987 = vadd.f32 0.0, %v1986
        %v1988 = vpop.f32.mrf.mxu0
        %1989 = vmatprep.mubr.f32.mxu0 0.0
        %1990 = vmatmul.mubr.f32.gmra.mxu0 %v612
        %v1991 = vpop.f32.mrf.mxu0
        %v1992 = vadd.f32 0.0, %v1991
        %v1993 = vpop.f32.mrf.mxu0
        %1994 = vdwg.mxu0
        %v1995 = vmul.f32 %v462, %v464
        %v1996 = vmul.f32 %v463, %v465
        %v1998 = vsel %vm472, %v1995, 0
        %v2001 = vsel %vm472, %v1996, 0
        %2003 = vmatprep.subr.mxu0 0.0
        %2004 = vmatpush1.msra.mxu0 0.0
        %2005 = vmatprep.subr.mxu0 0.0
        %2006 = vmatpush1.msra.mxu0 0.0
        %2007 = vmatprep.subr.mxu0 0.0
        %2008 = vmatpush1.msra.mxu0 0.0
        %2009 = vmatprep.subr.mxu0 0.0
        %2010 = vmatpush1.msra.mxu0 0.0
        %2011 = vmatprep.subr.mxu0 0.0
        %2012 = vmatpush1.msra.mxu0 0.0
        %2013 = vmatprep.subr.mxu0 0.0
        %2014 = vmatpush1.msra.mxu0 0.0
        %2015 = vmatprep.subr.mxu0 0.0
        %2016 = vmatpush1.msra.mxu0 0.0
        %2017 = vmatprep.subr.mxu0 0.0
        %2018 = vmatpush1.msra.mxu0 0.0
        %2019 = vmatprep.subr.mxu0 0.0
        %2020 = vmatpush1.msra.mxu0 0.0
        %2021 = vmatprep.subr.mxu0 0.0
        %2022 = vmatpush1.msra.mxu0 0.0
        %2023 = vmatprep.subr.mxu0 0.0
        %2024 = vmatpush1.msra.mxu0 0.0
        %2025 = vmatprep.subr.mxu0 0.0
        %2026 = vmatpush1.msra.mxu0 0.0
        %2027 = vmatprep.subr.mxu0 0.0
        %2028 = vmatpush1.msra.mxu0 0.0
        %2029 = vmatprep.subr.mxu0 0.0
        %2030 = vmatpush1.msra.mxu0 0.0
        %2031 = vmatprep.subr.mxu0 0.0
        %2032 = vmatpush1.msra.mxu0 %v451
        %2033 = vmatprep.subr.mxu0 0.0
        %2034 = vmatpush1.msra.mxu0 %v450
        %2035 = vmatprep.subr.mxu0 0.0
        %2036 = vmatpush2.msra.mxu0 0.0
        %2037 = vmatprep.subr.mxu0 0.0
        %2038 = vmatpush2.msra.mxu0 0.0
        %2039 = vmatprep.subr.mxu0 0.0
        %2040 = vmatpush2.msra.mxu0 0.0
        %2041 = vmatprep.subr.mxu0 0.0
        %2042 = vmatpush2.msra.mxu0 0.0
        %2043 = vmatprep.subr.mxu0 0.0
        %2044 = vmatpush2.msra.mxu0 0.0
        %2045 = vmatprep.subr.mxu0 0.0
        %2046 = vmatpush2.msra.mxu0 0.0
        %2047 = vmatprep.subr.mxu0 0.0
        %2048 = vmatpush2.msra.mxu0 0.0
        %2049 = vmatprep.subr.mxu0 0.0
        %2050 = vmatpush2.msra.mxu0 0.0
        %2051 = vmatprep.subr.mxu0 0.0
        %2052 = vmatpush2.msra.mxu0 0.0
        %2053 = vmatprep.subr.mxu0 0.0
        %2054 = vmatpush2.msra.mxu0 0.0
        %2055 = vmatprep.subr.mxu0 0.0
        %2056 = vmatpush2.msra.mxu0 0.0
        %2057 = vmatprep.subr.mxu0 0.0
        %2058 = vmatpush2.msra.mxu0 0.0
        %2059 = vmatprep.subr.mxu0 0.0
        %2060 = vmatpush2.msra.mxu0 0.0
        %2061 = vmatprep.subr.mxu0 0.0
        %2062 = vmatpush2.msra.mxu0 0.0
        %2063 = vmatprep.subr.mxu0 0.0
        %2064 = vmatpush2.msra.mxu0 0.0
        %2065 = vmatprep.subr.mxu0 0.0
        %2066 = vmatpush2.msra.mxu0 0.0
        %2067 = vmatprep.mubr.f32.mxu0 0.0
        %2068 = vmatmul.mubr.f32.gmra.mxu0 %v1998
        %v2069 = vpop.f32.mrf.mxu0
        %v2070 = vadd.f32 0.0, %v2069
        %v2071 = vpop.f32.mrf.mxu0
        %2072 = vmatprep.mubr.f32.mxu0 0.0
        %2073 = vmatmul.mubr.f32.gmra.mxu0 %v2001
        %v2074 = vpop.f32.mrf.mxu0
        %v2075 = vadd.f32 0.0, %v2074
        %v2076 = vpop.f32.mrf.mxu0
        %2077 = vdwg.mxu0
        %2078 = vmatprep.subr.mxu0 0.0
        %2079 = vmatpush1.msra.mxu0 0.0
        %2080 = vmatprep.subr.mxu0 0.0
        %2081 = vmatpush1.msra.mxu0 0.0
        %2082 = vmatprep.subr.mxu0 0.0
        %2083 = vmatpush1.msra.mxu0 0.0
        %2084 = vmatprep.subr.mxu0 0.0
        %2085 = vmatpush1.msra.mxu0 0.0
        %2086 = vmatprep.subr.mxu0 0.0
        %2087 = vmatpush1.msra.mxu0 0.0
        %2088 = vmatprep.subr.mxu0 0.0
        %2089 = vmatpush1.msra.mxu0 0.0
        %2090 = vmatprep.subr.mxu0 0.0
        %2091 = vmatpush1.msra.mxu0 0.0
        %2092 = vmatprep.subr.mxu0 0.0
        %2093 = vmatpush1.msra.mxu0 0.0
        %2094 = vmatprep.subr.mxu0 0.0
        %2095 = vmatpush1.msra.mxu0 0.0
        %2096 = vmatprep.subr.mxu0 0.0
        %2097 = vmatpush1.msra.mxu0 0.0
        %2098 = vmatprep.subr.mxu0 0.0
        %2099 = vmatpush1.msra.mxu0 0.0
        %2100 = vmatprep.subr.mxu0 0.0
        %2101 = vmatpush1.msra.mxu0 0.0
        %2102 = vmatprep.subr.mxu0 0.0
        %2103 = vmatpush1.msra.mxu0 0.0
        %2104 = vmatprep.subr.mxu0 0.0
        %2105 = vmatpush1.msra.mxu0 0.0
        %2106 = vmatprep.subr.mxu0 0.0
        %2107 = vmatpush1.msra.mxu0 %v2075
        %2108 = vmatprep.subr.mxu0 0.0
        %2109 = vmatpush1.msra.mxu0 %v2070
        %2110 = vmatprep.subr.mxu0 0.0
        %2111 = vmatpush2.msra.mxu0 0.0
        %2112 = vmatprep.subr.mxu0 0.0
        %2113 = vmatpush2.msra.mxu0 0.0
        %2114 = vmatprep.subr.mxu0 0.0
        %2115 = vmatpush2.msra.mxu0 0.0
        %2116 = vmatprep.subr.mxu0 0.0
        %2117 = vmatpush2.msra.mxu0 0.0
        %2118 = vmatprep.subr.mxu0 0.0
        %2119 = vmatpush2.msra.mxu0 0.0
        %2120 = vmatprep.subr.mxu0 0.0
        %2121 = vmatpush2.msra.mxu0 0.0
        %2122 = vmatprep.subr.mxu0 0.0
        %2123 = vmatpush2.msra.mxu0 0.0
        %2124 = vmatprep.subr.mxu0 0.0
        %2125 = vmatpush2.msra.mxu0 0.0
        %2126 = vmatprep.subr.mxu0 0.0
        %2127 = vmatpush2.msra.mxu0 0.0
        %2128 = vmatprep.subr.mxu0 0.0
        %2129 = vmatpush2.msra.mxu0 0.0
        %2130 = vmatprep.subr.mxu0 0.0
        %2131 = vmatpush2.msra.mxu0 0.0
        %2132 = vmatprep.subr.mxu0 0.0
        %2133 = vmatpush2.msra.mxu0 0.0
        %2134 = vmatprep.subr.mxu0 0.0
        %2135 = vmatpush2.msra.mxu0 0.0
        %2136 = vmatprep.subr.mxu0 0.0
        %2137 = vmatpush2.msra.mxu0 0.0
        %2138 = vmatprep.subr.mxu0 0.0
        %2139 = vmatpush2.msra.mxu0 0.0
        %2140 = vmatprep.subr.mxu0 0.0
        %2141 = vmatpush2.msra.mxu0 0.0
        %2142 = vmatprep.mubr.f32.mxu0 0.0
        %2143 = vmatmul.mubr.f32.gmra.mxu0 %v609
        %v2144 = vpop.f32.mrf.mxu0
        %v2145 = vadd.f32 0.0, %v2144
        %v2146 = vpop.f32.mrf.mxu0
        %2147 = vmatprep.mubr.f32.mxu0 0.0
        %2148 = vmatmul.mubr.f32.gmra.mxu0 %v612
        %v2149 = vpop.f32.mrf.mxu0
        %v2150 = vadd.f32 0.0, %v2149
        %v2151 = vpop.f32.mrf.mxu0
        %2152 = vdwg.mxu0
        %v2153 = vmul.f32 %v1515, %v1515
        %v2154 = vmul.f32 %v1520, %v1520
        %v2155 = vmul.f32 %v1671, %v1671
        %v2156 = vmul.f32 %v1676, %v1676
        %v2157 = vmul.f32 %v1515, %v1671
        %v2158 = vmul.f32 %v1520, %v1676
        %v2159 = vsub.f32 %v1829, %v2153
        %v2160 = vsub.f32 %v1834, %v2154
        %v2161 = vsub.f32 %v1987, %v2155
        %v2162 = vsub.f32 %v1992, %v2156
        %v2163 = vsub.f32 %v2145, %v2157
        %v2164 = vsub.f32 %v2150, %v2158
        %v2165 = vmul.f32 %v2157, 2.0
        %v2166 = vmul.f32 %v2158, 2.0
        %v2167 = vadd.f32 %v2165, 0.0001
        %v2168 = vadd.f32 %v2166, 0.0001
        %v2169 = vmul.f32 %v2163, 2.0
        %v2170 = vmul.f32 %v2164, 2.0
        %v2171 = vadd.f32 %v2169, 0.0009
        %v2172 = vadd.f32 %v2170, 0.0009
        %v2173 = vmul.f32 %v2167, %v2171
        %v2174 = vmul.f32 %v2168, %v2172
        %v2175 = vadd.f32 %v2153, %v2155
        %v2176 = vadd.f32 %v2154, %v2156
        %v2177 = vadd.f32 %v2175, 0.0001
        %v2178 = vadd.f32 %v2176, 0.0001
        %v2179 = vadd.f32 %v2159, %v2161
        %v2180 = vadd.f32 %v2160, %v2162
        %v2181 = vadd.f32 %v2179, 0.0009
        %v2182 = vadd.f32 %v2180, 0.0009
        %v2183 = vmul.f32 %v2177, %v2181
        %v2184 = vmul.f32 %v2178, %v2182
        %v2185 = vrcp.pop %v2183
        %v2186 = vmul.f32 %v2173, %v2185
        %v2187 = vrcp.pop %v2184
        %v2188 = vmul.f32 %v2174, %v2187
        %v2189 = vsel %vm472, %v2186, 0.0
        %v2190 = vsel %vm472, %v2188, 0.0
        %v2191 = vadd.f32 %v2189, %v2190
        %2192 = vadd.xlane.f32.xlu0 %v2191
        %v2193 = vpop.xlane.xlu0 %2192
        %v2194 = vrot.slane %v2193, 4
        %v2195 = vadd.f32 %v2193, %v2194
        %v2196 = vrot.slane %v2195, 2
        %v2197 = vadd.f32 %v2195, %v2196
        %v2198 = vrot.slane %v2197, 1
        %v2199 = vadd.f32 %v2197, %v2198
        %s2200 = vtos %v2199
        %v2201 = vstv %s484
        %v2202 = vstv %s498
        %v2203 = vstv %s512
        %v2204 = vstv %s526
        %v2205 = vstv %s1366
        %v2206 = vstv %s2200
        %vm2207 = vcmask 1040384
        %v2208 = vsel %vm2207, %v2201, %v2202
        %vm2209 = vcmask 1041408
        %v2210 = vsel %vm2209, %v2208, %v2203
        %vm2211 = vcmask 1042432
        %v2212 = vsel %vm2211, %v2210, %v2204
        %vm2213 = vcmask 1043456
        %v2214 = vsel %vm2213, %v2212, %v2205
        %vm2215 = vcmask 1044480
        %v2216 = vsel %vm2215, %v2214, %v2206
        %vm2217 = vcmask 1045504
        %v2218 = vsel %vm2217, %v2216, 0.0
        %2219 = vst [vmem:[%s437] sm:$0xff] %v2218
        %s2220 = sand.u32 %s202, 1
        %s2221 = scalar_lea.sflag [#allocation4], %s2220
        %s2222 = sand.u32 %s202, 1
        %s2223 = smul.addr %s2222, 8
        %s2224 = scalar_lea.vmem [#allocation13], %s2223
        // Predicated region
        $region69: #{tpu_custom_call.1} parent=43 // pred_check
          %p2225 = pneg %p212
        $region70: #{tpu_custom_call.1} parent=43 // pred_check_branch
          %2227 = sbr.rel (%p2225) target = $region72
        $region71: #{tpu_custom_call.1} parent=43 // pred_region
          %s2229 = ssub.s32 128, 128
          %2230 = vsyncadd %s2221, %s2229
          %s2231 = smul.addr %s34, 4
          %s2232 = sadd.s32 %s35, %s2231
          %s2233 = smul.addr %s2232, 128
          %s2234 = scalar_lea.hbm %s6, %s2233
          %s2236 = sshll.u32 %s2224, 4
          %s2237 = int_to_ptr.vmem [resolvable:$true] %s2236
          %2239 = dma.vmem_to_hbm [thread:$0]  %s2237, 128, %s2234, %s2221
        $region72: #{tpu_custom_call.1} parent=43 // pred_fallthru
          _
      $region44: #{tpu_custom_call.1} parent=5 // pred_fallthru
        _
      %p2240 = scmp.le.s32.totalorder 2, %s25
      // Predicated region
      $region73: #{tpu_custom_call.1} parent=5 // pred_check
        %p2241 = pneg %p2240
      $region74: #{tpu_custom_call.1} parent=5 // pred_check_branch
        %2243 = sbr.rel (%p2241) target = $region76
      $region75: #{tpu_custom_call.1} parent=5 // pred_region
        %s2244 = ssub.s32 %s25, 2
        // Predicated region
        $region77: #{tpu_custom_call.1} parent=75 // pred_check
          %p2245 = pneg %p218
        $region78: #{tpu_custom_call.1} parent=75 // pred_check_branch
          %2247 = sbr.rel (%p2245) target = $region80
        $region79: #{tpu_custom_call.1} parent=75 // pred_region
          %s2248 = sand.u32 %s203, 1
          %s2249 = scalar_lea.sflag [#allocation4], %s2248
          %s2250 = sand.u32 %s203, 1
          %s2251 = smul.addr %s2250, 8
          %s2252 = scalar_lea.vmem [#allocation13], %s2251
          %2253 = dma.done %s2249, 128
        $region80: #{tpu_custom_call.1} parent=75 // pred_fallthru
          _
      $region76: #{tpu_custom_call.1} parent=5 // pred_fallthru
        _
    $region6: #{tpu_custom_call.1} parent=1 // loop_footer
      %s29 = sadd.s32 1, %s25
    $region7: #{tpu_custom_call.1} parent=1 // loop_footer_branch
      %24 = sbr.rel target = $region3
    $region8: #{tpu_custom_call.1} parent=1 // loop_exit
      _
    %2254 = vsyncpa [#allocation3], 1
    %s2255 = scalar_lea.sflag [#allocation3], 1
    %2256 = vsyncpa %s2255, 1
    %2257 = vsyncpa [#allocation6], 1
    %s2258 = scalar_lea.sflag [#allocation6], 1
    %2259 = vsyncpa %s2258, 1
    %2260 = vsyncpa [#allocation9], 1
    %s2261 = scalar_lea.sflag [#allocation9], 1
    %2262 = vsyncpa %s2261, 1
    %2263 = vsyncpa [#allocation12], 1
    %2264 = vsyncpa [#allocation4], 1
    %s2265 = scalar_lea.sflag [#allocation4], 1
    %2266 = vsyncpa %s2265, 1

</llo_original>
